<compile_context>
chip_gen: v6e
topology: v6e:2x2x1
jax: 0.10.0
libtpu: 0.0.40
codegen_flags: <defaults>
</compile_context>

<pallas_src>
import functools

import jax
import jax.numpy as jnp
from jax import lax
from jax.experimental import pallas as pl
from jax.experimental.pallas import tpu as pltpu

EPS = 1e-8
K = 5      # depthwise kernel size (fixed by the module: kSize = 2*stride+1 = 5)
PAD = 2    # (K - 1) // 2


def _glob_ln(v, gamma, beta):
    """Global LayerNorm over a whole (time, channels) tile, single-pass stats."""
    cnt = float(v.shape[0] * v.shape[1])
    s = jnp.sum(v)
    ss = jnp.sum(v * v)
    m = s / cnt
    var = jnp.maximum(ss / cnt - m * m, 0.0)
    return (v - m) * lax.rsqrt(var + EPS) * gamma + beta


def _make_kernel(depth):
    def kernel(alpha_ref, x_ref, w1t_ref, b1_ref, g1_ref, be1_ref,
               dww_ref, dwb_ref, dwg_ref, dwbe_ref,
               g2_ref, be2_ref, w2t_ref, b2_ref,
               o_ref, pad_in, *lvl):
        T = x_ref.shape[1]
        Cm = w1t_ref.shape[1]
        zhalo = jnp.zeros((PAD, Cm), jnp.float32)

        # ---- 1x1 projection (MXU, bf16 in / f32 acc) + GlobLN + PReLU -------
        x = x_ref[0]                                                # (T, Cx)
        y = jnp.dot(x.astype(jnp.bfloat16), w1t_ref[...].astype(jnp.bfloat16),
                    preferred_element_type=jnp.float32) + b1_ref[...]
        y = _glob_ln(y, g1_ref[...], be1_ref[...])
        y = jnp.where(y > 0, y, alpha_ref[0] * y)                   # scalar PReLU

        pad_in[0:PAD, :] = zhalo                                    # zero halos
        pad_in[PAD + T:PAD + T + PAD, :] = zhalo
        pad_in[PAD:PAD + T, :] = y

        # ---- encoder: depthwise k=5 conv (+bias) + GlobLN per level ---------
        src, L = pad_in, T
        for k in range(depth):
            stride = 1 if k == 0 else 2
            Lout = L if stride == 1 else L // 2
            w_lvl = dww_ref[k]                                      # (K, Cm)
            acc = None
            for j in range(K):
                if stride == 1:
                    tap = src[j:j + Lout, :]
                else:
                    tap = src[pl.ds(j, Lout, stride=2), :]          # sublane stride
                term = w_lvl[j:j + 1, :] * tap
                acc = term if acc is None else acc + term
            acc = acc + dwb_ref[k]
            ok = _glob_ln(acc, dwg_ref[k], dwbe_ref[k])             # (Lout, Cm)
            dst = lvl[k]
            dst[0:PAD, :] = zhalo
            dst[PAD + Lout:PAD + Lout + PAD, :] = zhalo
            dst[PAD:PAD + Lout, :] = ok
            src, L = dst, Lout

        # ---- decoder: in-place x2 nearest upsample + add, coarse -> fine ----
        for k in range(depth - 2, -1, -1):
            Lc = T >> (k + 1)
            coarse = lvl[k + 1][PAD:PAD + Lc, :]                    # (Lc, Cm)
            fine = lvl[k]
            for p in range(2):                                      # out[2t+p] += in[t]
                sl = pl.ds(PAD + p, Lc, stride=2)
                fine[sl, :] = fine[sl, :] + coarse

        # ---- final GlobLN + PReLU + 1x1 res conv (MXU) + residual -----------
        merged = lvl[0][PAD:PAD + T, :]                             # (T, Cm)
        e = _glob_ln(merged, g2_ref[...], be2_ref[...])
        e = jnp.where(e > 0, e, alpha_ref[1] * e)
        out = jnp.dot(e.astype(jnp.bfloat16), w2t_ref[...].astype(jnp.bfloat16),
                      preferred_element_type=jnp.float32)
        o_ref[0] = out + b2_ref[...] + x_ref[0]

    return kernel


def uconv_block_forward(x, p, depth):
    """x: (B, Cx, T) float32 -> (B, Cx, T), matching UConvBlock.forward."""
    B, Cx, T = x.shape
    Cm = p['w1'].shape[0]
    assert T % (1 << (depth - 1)) == 0

    # One-off layout plumbing (tiny tensors): time-major activations, lane-major params.
    x_tc = jnp.transpose(x, (0, 2, 1))                              # (B, T, Cx)
    w1t = jnp.transpose(p['w1'])                                    # (Cx, Cm)
    w2t = jnp.transpose(p['w2'])                                    # (Cm, Cx)
    b1 = p['b1'].reshape(1, Cm)
    g1 = p['g1'].reshape(1, Cm)
    be1 = p['be1'].reshape(1, Cm)
    g2 = p['g2'].reshape(1, Cm)
    be2 = p['be2'].reshape(1, Cm)
    b2 = p['b2'].reshape(1, Cx)
    dww = jnp.stack([jnp.transpose(w) for w in p['dw_w']], axis=0)  # (depth, K, Cm)
    dwb = jnp.stack([b.reshape(1, Cm) for b in p['dw_b']], axis=0)  # (depth, 1, Cm)
    dwg = jnp.stack([g.reshape(1, Cm) for g in p['dw_g']], axis=0)
    dwbe = jnp.stack([b.reshape(1, Cm) for b in p['dw_be']], axis=0)
    alphas = jnp.concatenate([p['a1'].reshape(1), p['a2'].reshape(1)])  # (2,)

    full2 = lambda bi: (0, 0)
    full3 = lambda bi: (0, 0, 0)
    scratch = [pltpu.VMEM((T + 2 * PAD, Cm), jnp.float32)]          # padded proj output
    scratch += [pltpu.VMEM(((T >> k) + 2 * PAD, Cm), jnp.float32)   # padded level outputs
                for k in range(depth)]

    out_tc = pl.pallas_call(
        _make_kernel(depth),
        out_shape=jax.ShapeDtypeStruct((B, T, Cx), jnp.float32),
        grid=(B,),
        in_specs=[
            pl.BlockSpec(memory_space=pltpu.MemorySpace.SMEM),       # alphas (2,)
            pl.BlockSpec((1, T, Cx), lambda bi: (bi, 0, 0)),         # x
            pl.BlockSpec((Cx, Cm), full2),                           # w1t
            pl.BlockSpec((1, Cm), full2),                            # b1
            pl.BlockSpec((1, Cm), full2),                            # g1
            pl.BlockSpec((1, Cm), full2),                            # be1
            pl.BlockSpec((depth, K, Cm), full3),                     # dw weights
            pl.BlockSpec((depth, 1, Cm), full3),                     # dw bias
            pl.BlockSpec((depth, 1, Cm), full3),                     # dw gamma
            pl.BlockSpec((depth, 1, Cm), full3),                     # dw beta
            pl.BlockSpec((1, Cm), full2),                            # g2
            pl.BlockSpec((1, Cm), full2),                            # be2
            pl.BlockSpec((Cm, Cx), full2),                           # w2t
            pl.BlockSpec((1, Cx), full2),                            # b2
        ],
        out_specs=pl.BlockSpec((1, T, Cx), lambda bi: (bi, 0, 0)),
        scratch_shapes=scratch,
        compiler_params=pltpu.CompilerParams(
            dimension_semantics=("parallel",),
            vmem_limit_bytes=64 * 1024 * 1024),
    )(alphas, x_tc, w1t, b1, g1, be1, dww, dwb, dwg, dwbe, g2, be2, w2t, b2)
    return jnp.transpose(out_tc, (0, 2, 1))


# ---------------------- deterministic parameter init -----------------------
def init_params(key, Cx, Cm, depth):
    ks = jax.random.split(key, 4 + depth)
    p = {
        'w1': 0.1 * jax.random.normal(ks[0], (Cm, Cx), jnp.float32),
        'b1': 0.1 * jax.random.normal(ks[1], (Cm, 1), jnp.float32),
        'g1': jnp.ones((Cm, 1), jnp.float32),
        'be1': jnp.zeros((Cm, 1), jnp.float32),
        'a1': jnp.full((1, 1), 0.25, jnp.float32),
        'g2': jnp.ones((Cm, 1), jnp.float32),
        'be2': jnp.zeros((Cm, 1), jnp.float32),
        'a2': jnp.full((1, 1), 0.25, jnp.float32),
        'w2': 0.1 * jax.random.normal(ks[2], (Cx, Cm), jnp.float32),
        'b2': 0.1 * jax.random.normal(ks[3], (Cx, 1), jnp.float32),
        'dw_w': [], 'dw_b': [], 'dw_g': [], 'dw_be': [],
    }
    for k in range(depth):
        kk = jax.random.split(ks[4 + k], 2)
        p['dw_w'].append(0.2 * jax.random.normal(kk[0], (Cm, K), jnp.float32))
        p['dw_b'].append(0.1 * jax.random.normal(kk[1], (Cm, 1), jnp.float32))
        p['dw_g'].append(jnp.ones((Cm, 1), jnp.float32))
        p['dw_be'].append(jnp.zeros((Cm, 1), jnp.float32))
    return p


# ------------------------- pure-JAX reference ------------------------------
def _ref_globln(x, g, be):
    m = jnp.mean(x, axis=(1, 2), keepdims=True)
    v = jnp.mean((x - m) ** 2, axis=(1, 2), keepdims=True)
    n = (x - m) / jnp.sqrt(v + EPS)
    return g.reshape(1, -1, 1) * n + be.reshape(1, -1, 1)


def _ref_prelu(x, a):
    return jnp.where(x > 0, x, a.reshape(()) * x)


def _ref_mm(w, v):
    # mirrors the kernel's MXU precision: bf16 inputs, f32 accumulation
    return jnp.einsum('oi,bit->bot', w.astype(jnp.bfloat16), v.astype(jnp.bfloat16),
                      preferred_element_type=jnp.float32)


def reference_forward(x, p, depth):
    y = _ref_mm(p['w1'], x) + p['b1'].reshape(1, -1, 1)
    y = _ref_prelu(_ref_globln(y, p['g1'], p['be1']), p['a1'])
    outs, cur = [], y
    for k in range(depth):
        stride = 1 if k == 0 else 2
        C = cur.shape[1]
        z = lax.conv_general_dilated(
            cur, p['dw_w'][k].reshape(C, 1, K),
            window_strides=(stride,), padding=[(PAD, PAD)],
            dimension_numbers=('NCH', 'OIH', 'NCH'),
            feature_group_count=C) + p['dw_b'][k].reshape(1, -1, 1)
        z = _ref_globln(z, p['dw_g'][k], p['dw_be'][k])
        outs.append(z)
        cur = z
    for _ in range(depth - 1):
        lo = outs.pop(-1)
        outs[-1] = outs[-1] + jnp.repeat(lo, 2, axis=-1)
    e = _ref_prelu(_ref_globln(outs[-1], p['g2'], p['be2']), p['a2'])
    return _ref_mm(p['w2'], e) + p['b2'].reshape(1, -1, 1) + x


if __name__ == "__main__":
    # module defaults: out_channels=128, in_channels=512, depth=4; small analog
    # (T must be divisible by 2**(depth-1)):
    B, out_channels, in_channels, T, depth = 2, 16, 32, 32, 4
    key = jax.random.PRNGKey(0)
    kx, kp = jax.random.split(key)
    x = jax.random.normal(kx, (B, out_channels, T), jnp.float32)
    params = init_params(kp, out_channels, in_channels, depth)

    fwd = jax.jit(functools.partial(uconv_block_forward, depth=depth))
    out = jax.block_until_ready(fwd(x, params))

    ref = jax.block_until_ready(reference_forward(x, params, depth))
    assert out.shape == x.shape
    err = float(jnp.max(jnp.abs(out - ref)))
    if err < 2e-3:
        print("KERNEL_OK")
    else:
        print("MISMATCH", err)
</pallas_src>

<mosaic_0001>
module attributes {stable_mosaic.version = 11 : i64} {
  func.func @kernel(%arg0: i32, %arg1: memref<2xf32, #tpu.memory_space<smem>>, %arg2: memref<1x32x16xf32, #tpu.memory_space<vmem>>, %arg3: memref<16x32xf32, #tpu.memory_space<vmem>>, %arg4: memref<1x32xf32, #tpu.memory_space<vmem>>, %arg5: memref<1x32xf32, #tpu.memory_space<vmem>>, %arg6: memref<1x32xf32, #tpu.memory_space<vmem>>, %arg7: memref<4x5x32xf32, #tpu.memory_space<vmem>>, %arg8: memref<4x1x32xf32, #tpu.memory_space<vmem>>, %arg9: memref<4x1x32xf32, #tpu.memory_space<vmem>>, %arg10: memref<4x1x32xf32, #tpu.memory_space<vmem>>, %arg11: memref<1x32xf32, #tpu.memory_space<vmem>>, %arg12: memref<1x32xf32, #tpu.memory_space<vmem>>, %arg13: memref<32x16xf32, #tpu.memory_space<vmem>>, %arg14: memref<1x16xf32, #tpu.memory_space<vmem>>, %arg15: memref<1x32x16xf32, #tpu.memory_space<vmem>>, %arg16: memref<36x32xf32, #tpu.memory_space<vmem>>, %arg17: memref<36x32xf32, #tpu.memory_space<vmem>>, %arg18: memref<20x32xf32, #tpu.memory_space<vmem>>, %arg19: memref<12x32xf32, #tpu.memory_space<vmem>>, %arg20: memref<8x32xf32, #tpu.memory_space<vmem>>) attributes {dimension_semantics = [#tpu.dimension_semantics<parallel>], iteration_bounds = array<i64: 2>, scalar_prefetch = 0 : i64, scratch_operands = 5 : i64, tpu.core_type = #tpu.core_type<tc>, window_params = [{transform_indices = @transform_0, window_bounds = array<i64: 2>}, {transform_indices = @transform_1, window_bounds = array<i64: 1, 32, 16>}, {pipeline_mode = #tpu.pipeline_mode<synchronous>, transform_indices = @transform_2, window_bounds = array<i64: 16, 32>}, {pipeline_mode = #tpu.pipeline_mode<synchronous>, transform_indices = @transform_3, window_bounds = array<i64: 1, 32>}, {pipeline_mode = #tpu.pipeline_mode<synchronous>, transform_indices = @transform_4, window_bounds = array<i64: 1, 32>}, {pipeline_mode = #tpu.pipeline_mode<synchronous>, transform_indices = @transform_5, window_bounds = array<i64: 1, 32>}, {pipeline_mode = #tpu.pipeline_mode<synchronous>, transform_indices = @transform_6, window_bounds = array<i64: 4, 5, 32>}, {pipeline_mode = #tpu.pipeline_mode<synchronous>, transform_indices = @transform_7, window_bounds = array<i64: 4, 1, 32>}, {pipeline_mode = #tpu.pipeline_mode<synchronous>, transform_indices = @transform_8, window_bounds = array<i64: 4, 1, 32>}, {pipeline_mode = #tpu.pipeline_mode<synchronous>, transform_indices = @transform_9, window_bounds = array<i64: 4, 1, 32>}, {pipeline_mode = #tpu.pipeline_mode<synchronous>, transform_indices = @transform_10, window_bounds = array<i64: 1, 32>}, {pipeline_mode = #tpu.pipeline_mode<synchronous>, transform_indices = @transform_11, window_bounds = array<i64: 1, 32>}, {pipeline_mode = #tpu.pipeline_mode<synchronous>, transform_indices = @transform_12, window_bounds = array<i64: 32, 16>}, {pipeline_mode = #tpu.pipeline_mode<synchronous>, transform_indices = @transform_13, window_bounds = array<i64: 1, 16>}, {transform_indices = @transform_14, window_bounds = array<i64: 1, 32, 16>}]} {
    %cst = arith.constant 0.000000e+00 : f32
    %0 = vector.broadcast %cst : f32 to vector<2x32xf32>
    %c0 = arith.constant 0 : index
    %c0_0 = arith.constant 0 : index
    %c0_1 = arith.constant 0 : index
    %1 = vector.load %arg2[%c0, %c0_0, %c0_1] : memref<1x32x16xf32, #tpu.memory_space<vmem>>, vector<1x32x16xf32>
    %2 = vector.shape_cast %1 : vector<1x32x16xf32> to vector<32x16xf32>
    %3 = arith.truncf %2 : vector<32x16xf32> to vector<32x16xbf16>
    %c0_2 = arith.constant 0 : index
    %c0_3 = arith.constant 0 : index
    %4 = vector.load %arg3[%c0_2, %c0_3] : memref<16x32xf32, #tpu.memory_space<vmem>>, vector<16x32xf32>
    %5 = arith.truncf %4 : vector<16x32xf32> to vector<16x32xbf16>
    %cst_4 = arith.constant dense<0.000000e+00> : vector<32x32xf32>
    %6 = tpu.matmul %3, %5, %cst_4 {dimension_numbers = #tpu.dot_dimension_numbers<[1], [0], [0], [1], [0, 0, 1, 1], [], []>} : vector<32x16xbf16>, vector<16x32xbf16>, vector<32x32xf32> -> vector<32x32xf32>
    %c0_5 = arith.constant 0 : index
    %c0_6 = arith.constant 0 : index
    %7 = vector.load %arg4[%c0_5, %c0_6] : memref<1x32xf32, #tpu.memory_space<vmem>>, vector<1x32xf32>
    %8 = vector.broadcast %7 : vector<1x32xf32> to vector<32x32xf32>
    %9 = arith.addf %6, %8 : vector<32x32xf32>
    %c0_7 = arith.constant 0 : index
    %c0_8 = arith.constant 0 : index
    %10 = vector.load %arg5[%c0_7, %c0_8] : memref<1x32xf32, #tpu.memory_space<vmem>>, vector<1x32xf32>
    %c0_9 = arith.constant 0 : index
    %c0_10 = arith.constant 0 : index
    %11 = vector.load %arg6[%c0_9, %c0_10] : memref<1x32xf32, #tpu.memory_space<vmem>>, vector<1x32xf32>
    %12 = vector.shape_cast %9 : vector<32x32xf32> to vector<1x32x32xf32>
    %cst_11 = arith.constant dense<0.000000e+00> : vector<1xf32>
    %13 = vector.multi_reduction <add>, %12, %cst_11 [1, 2] : vector<1x32x32xf32> to vector<1xf32>
    %14 = vector.shape_cast %13 : vector<1xf32> to vector<1x1x1xf32>
    %15 = vector.extract %14[0, 0, 0] : f32 from vector<1x1x1xf32>
    %16 = arith.mulf %9, %9 : vector<32x32xf32>
    %17 = vector.shape_cast %16 : vector<32x32xf32> to vector<1x32x32xf32>
    %cst_12 = arith.constant dense<0.000000e+00> : vector<1xf32>
    %18 = vector.multi_reduction <add>, %17, %cst_12 [1, 2] : vector<1x32x32xf32> to vector<1xf32>
    %19 = vector.shape_cast %18 : vector<1xf32> to vector<1x1x1xf32>
    %20 = vector.extract %19[0, 0, 0] : f32 from vector<1x1x1xf32>
    %cst_13 = arith.constant 1.024000e+03 : f32
    %21 = arith.divf %15, %cst_13 : f32
    %cst_14 = arith.constant 1.024000e+03 : f32
    %22 = arith.divf %20, %cst_14 : f32
    %23 = arith.mulf %21, %21 : f32
    %24 = arith.subf %22, %23 : f32
    %cst_15 = arith.constant 0.000000e+00 : f32
    %25 = arith.maximumf %24, %cst_15 : f32
    %26 = vector.broadcast %21 : f32 to vector<32x32xf32>
    %27 = arith.subf %9, %26 : vector<32x32xf32>
    %cst_16 = arith.constant 9.99999993E-9 : f32
    %28 = arith.addf %25, %cst_16 : f32
    %29 = math.rsqrt %28 : f32
    %30 = vector.broadcast %29 : f32 to vector<32x32xf32>
    %31 = arith.mulf %27, %30 : vector<32x32xf32>
    %32 = vector.broadcast %10 : vector<1x32xf32> to vector<32x32xf32>
    %33 = arith.mulf %31, %32 : vector<32x32xf32>
    %34 = vector.broadcast %11 : vector<1x32xf32> to vector<32x32xf32>
    %35 = arith.addf %33, %34 : vector<32x32xf32>
    %cst_17 = arith.constant 0.000000e+00 : f32
    %36 = vector.broadcast %cst_17 : f32 to vector<32x32xf32>
    %37 = arith.cmpf ogt, %35, %36 : vector<32x32xf32>
    %c0_18 = arith.constant 0 : index
    %38 = memref.load %arg1[%c0_18] : memref<2xf32, #tpu.memory_space<smem>>
    %39 = vector.broadcast %38 : f32 to vector<32x32xf32>
    %40 = arith.mulf %39, %35 : vector<32x32xf32>
    %41 = arith.select %37, %35, %40 : vector<32x32xi1>, vector<32x32xf32>
    %c0_19 = arith.constant 0 : index
    %c0_20 = arith.constant 0 : index
    %42 = vector.load %arg16[%c0_19, %c0_20] : memref<36x32xf32, #tpu.memory_space<vmem>>, vector<2x32xf32>
    tpu.vector_store %arg16[%c0_19, %c0_20], %0 {strides = array<i32>} : memref<36x32xf32, #tpu.memory_space<vmem>>, vector<2x32xf32>,
    %c34 = arith.constant 34 : index
    %c0_21 = arith.constant 0 : index
    %43 = vector.load %arg16[%c34, %c0_21] : memref<36x32xf32, #tpu.memory_space<vmem>>, vector<2x32xf32>
    tpu.vector_store %arg16[%c34, %c0_21], %0 {strides = array<i32>} : memref<36x32xf32, #tpu.memory_space<vmem>>, vector<2x32xf32>,
    %c2 = arith.constant 2 : index
    %c0_22 = arith.constant 0 : index
    %44 = vector.load %arg16[%c2, %c0_22] : memref<36x32xf32, #tpu.memory_space<vmem>>, vector<32x32xf32>
    tpu.vector_store %arg16[%c2, %c0_22], %41 {strides = array<i32>} : memref<36x32xf32, #tpu.memory_space<vmem>>, vector<32x32xf32>,
    %c0_23 = arith.constant 0 : index
    %c0_24 = arith.constant 0 : index
    %c0_25 = arith.constant 0 : index
    %45 = vector.load %arg7[%c0_23, %c0_24, %c0_25] : memref<4x5x32xf32, #tpu.memory_space<vmem>>, vector<1x5x32xf32>
    %46 = vector.shape_cast %45 : vector<1x5x32xf32> to vector<5x32xf32>
    %c0_26 = arith.constant 0 : index
    %c0_27 = arith.constant 0 : index
    %47 = vector.load %arg16[%c0_26, %c0_27] : memref<36x32xf32, #tpu.memory_space<vmem>>, vector<32x32xf32>
    %48 = vector.extract_strided_slice %46 {offsets = [0, 0], sizes = [1, 32], strides = [1, 1]} : vector<5x32xf32> to vector<1x32xf32>
    %49 = vector.broadcast %48 : vector<1x32xf32> to vector<32x32xf32>
    %50 = arith.mulf %49, %47 : vector<32x32xf32>
    %c1 = arith.constant 1 : index
    %c0_28 = arith.constant 0 : index
    %51 = vector.load %arg16[%c1, %c0_28] : memref<36x32xf32, #tpu.memory_space<vmem>>, vector<32x32xf32>
    %52 = vector.extract_strided_slice %46 {offsets = [1, 0], sizes = [1, 32], strides = [1, 1]} : vector<5x32xf32> to vector<1x32xf32>
    %53 = vector.broadcast %52 : vector<1x32xf32> to vector<32x32xf32>
    %54 = arith.mulf %53, %51 : vector<32x32xf32>
    %55 = arith.addf %50, %54 : vector<32x32xf32>
    %c2_29 = arith.constant 2 : index
    %c0_30 = arith.constant 0 : index
    %56 = vector.load %arg16[%c2_29, %c0_30] : memref<36x32xf32, #tpu.memory_space<vmem>>, vector<32x32xf32>
    %57 = vector.extract_strided_slice %46 {offsets = [2, 0], sizes = [1, 32], strides = [1, 1]} : vector<5x32xf32> to vector<1x32xf32>
    %58 = vector.broadcast %57 : vector<1x32xf32> to vector<32x32xf32>
    %59 = arith.mulf %58, %56 : vector<32x32xf32>
    %60 = arith.addf %55, %59 : vector<32x32xf32>
    %c3 = arith.constant 3 : index
    %c0_31 = arith.constant 0 : index
    %61 = vector.load %arg16[%c3, %c0_31] : memref<36x32xf32, #tpu.memory_space<vmem>>, vector<32x32xf32>
    %62 = vector.extract_strided_slice %46 {offsets = [3, 0], sizes = [1, 32], strides = [1, 1]} : vector<5x32xf32> to vector<1x32xf32>
    %63 = vector.broadcast %62 : vector<1x32xf32> to vector<32x32xf32>
    %64 = arith.mulf %63, %61 : vector<32x32xf32>
    %65 = arith.addf %60, %64 : vector<32x32xf32>
    %c4 = arith.constant 4 : index
    %c0_32 = arith.constant 0 : index
    %66 = vector.load %arg16[%c4, %c0_32] : memref<36x32xf32, #tpu.memory_space<vmem>>, vector<32x32xf32>
    %67 = vector.extract_strided_slice %46 {offsets = [4, 0], sizes = [1, 32], strides = [1, 1]} : vector<5x32xf32> to vector<1x32xf32>
    %68 = vector.broadcast %67 : vector<1x32xf32> to vector<32x32xf32>
    %69 = arith.mulf %68, %66 : vector<32x32xf32>
    %70 = arith.addf %65, %69 : vector<32x32xf32>
    %c0_33 = arith.constant 0 : index
    %c0_34 = arith.constant 0 : index
    %c0_35 = arith.constant 0 : index
    %71 = vector.load %arg8[%c0_33, %c0_34, %c0_35] : memref<4x1x32xf32, #tpu.memory_space<vmem>>, vector<1x1x32xf32>
    %72 = vector.shape_cast %71 : vector<1x1x32xf32> to vector<1x32xf32>
    %73 = vector.broadcast %72 : vector<1x32xf32> to vector<32x32xf32>
    %74 = arith.addf %70, %73 : vector<32x32xf32>
    %c0_36 = arith.constant 0 : index
    %c0_37 = arith.constant 0 : index
    %c0_38 = arith.constant 0 : index
    %75 = vector.load %arg9[%c0_36, %c0_37, %c0_38] : memref<4x1x32xf32, #tpu.memory_space<vmem>>, vector<1x1x32xf32>
    %76 = vector.shape_cast %75 : vector<1x1x32xf32> to vector<1x32xf32>
    %c0_39 = arith.constant 0 : index
    %c0_40 = arith.constant 0 : index
    %c0_41 = arith.constant 0 : index
    %77 = vector.load %arg10[%c0_39, %c0_40, %c0_41] : memref<4x1x32xf32, #tpu.memory_space<vmem>>, vector<1x1x32xf32>
    %78 = vector.shape_cast %77 : vector<1x1x32xf32> to vector<1x32xf32>
    %79 = vector.shape_cast %74 : vector<32x32xf32> to vector<1x32x32xf32>
    %cst_42 = arith.constant dense<0.000000e+00> : vector<1xf32>
    %80 = vector.multi_reduction <add>, %79, %cst_42 [1, 2] : vector<1x32x32xf32> to vector<1xf32>
    %81 = vector.shape_cast %80 : vector<1xf32> to vector<1x1x1xf32>
    %82 = vector.extract %81[0, 0, 0] : f32 from vector<1x1x1xf32>
    %83 = arith.mulf %74, %74 : vector<32x32xf32>
    %84 = vector.shape_cast %83 : vector<32x32xf32> to vector<1x32x32xf32>
    %cst_43 = arith.constant dense<0.000000e+00> : vector<1xf32>
    %85 = vector.multi_reduction <add>, %84, %cst_43 [1, 2] : vector<1x32x32xf32> to vector<1xf32>
    %86 = vector.shape_cast %85 : vector<1xf32> to vector<1x1x1xf32>
    %87 = vector.extract %86[0, 0, 0] : f32 from vector<1x1x1xf32>
    %cst_44 = arith.constant 1.024000e+03 : f32
    %88 = arith.divf %82, %cst_44 : f32
    %cst_45 = arith.constant 1.024000e+03 : f32
    %89 = arith.divf %87, %cst_45 : f32
    %90 = arith.mulf %88, %88 : f32
    %91 = arith.subf %89, %90 : f32
    %cst_46 = arith.constant 0.000000e+00 : f32
    %92 = arith.maximumf %91, %cst_46 : f32
    %93 = vector.broadcast %88 : f32 to vector<32x32xf32>
    %94 = arith.subf %74, %93 : vector<32x32xf32>
    %cst_47 = arith.constant 9.99999993E-9 : f32
    %95 = arith.addf %92, %cst_47 : f32
    %96 = math.rsqrt %95 : f32
    %97 = vector.broadcast %96 : f32 to vector<32x32xf32>
    %98 = arith.mulf %94, %97 : vector<32x32xf32>
    %99 = vector.broadcast %76 : vector<1x32xf32> to vector<32x32xf32>
    %100 = arith.mulf %98, %99 : vector<32x32xf32>
    %101 = vector.broadcast %78 : vector<1x32xf32> to vector<32x32xf32>
    %102 = arith.addf %100, %101 : vector<32x32xf32>
    %c0_48 = arith.constant 0 : index
    %c0_49 = arith.constant 0 : index
    %103 = vector.load %arg17[%c0_48, %c0_49] : memref<36x32xf32, #tpu.memory_space<vmem>>, vector<2x32xf32>
    tpu.vector_store %arg17[%c0_48, %c0_49], %0 {strides = array<i32>} : memref<36x32xf32, #tpu.memory_space<vmem>>, vector<2x32xf32>,
    %c34_50 = arith.constant 34 : index
    %c0_51 = arith.constant 0 : index
    %104 = vector.load %arg17[%c34_50, %c0_51] : memref<36x32xf32, #tpu.memory_space<vmem>>, vector<2x32xf32>
    tpu.vector_store %arg17[%c34_50, %c0_51], %0 {strides = array<i32>} : memref<36x32xf32, #tpu.memory_space<vmem>>, vector<2x32xf32>,
    %c2_52 = arith.constant 2 : index
    %c0_53 = arith.constant 0 : index
    %105 = vector.load %arg17[%c2_52, %c0_53] : memref<36x32xf32, #tpu.memory_space<vmem>>, vector<32x32xf32>
    tpu.vector_store %arg17[%c2_52, %c0_53], %102 {strides = array<i32>} : memref<36x32xf32, #tpu.memory_space<vmem>>, vector<32x32xf32>,
    %c1_54 = arith.constant 1 : index
    %c0_55 = arith.constant 0 : index
    %c0_56 = arith.constant 0 : index
    %106 = vector.load %arg7[%c1_54, %c0_55, %c0_56] : memref<4x5x32xf32, #tpu.memory_space<vmem>>, vector<1x5x32xf32>
    %107 = vector.shape_cast %106 : vector<1x5x32xf32> to vector<5x32xf32>
    %c0_57 = arith.constant 0 : index
    %c0_58 = arith.constant 0 : index
    %108 = tpu.strided_load %arg17[%c0_57, %c0_58] {strides = array<i32: 2, 1>} : memref<36x32xf32, #tpu.memory_space<vmem>>, vector<16x32xf32>
    %109 = vector.extract_strided_slice %107 {offsets = [0, 0], sizes = [1, 32], strides = [1, 1]} : vector<5x32xf32> to vector<1x32xf32>
    %110 = vector.broadcast %109 : vector<1x32xf32> to vector<16x32xf32>
    %111 = arith.mulf %110, %108 : vector<16x32xf32>
    %c1_59 = arith.constant 1 : index
    %c0_60 = arith.constant 0 : index
    %112 = tpu.strided_load %arg17[%c1_59, %c0_60] {strides = array<i32: 2, 1>} : memref<36x32xf32, #tpu.memory_space<vmem>>, vector<16x32xf32>
    %113 = vector.extract_strided_slice %107 {offsets = [1, 0], sizes = [1, 32], strides = [1, 1]} : vector<5x32xf32> to vector<1x32xf32>
    %114 = vector.broadcast %113 : vector<1x32xf32> to vector<16x32xf32>
    %115 = arith.mulf %114, %112 : vector<16x32xf32>
    %116 = arith.addf %111, %115 : vector<16x32xf32>
    %c2_61 = arith.constant 2 : index
    %c0_62 = arith.constant 0 : index
    %117 = tpu.strided_load %arg17[%c2_61, %c0_62] {strides = array<i32: 2, 1>} : memref<36x32xf32, #tpu.memory_space<vmem>>, vector<16x32xf32>
    %118 = vector.extract_strided_slice %107 {offsets = [2, 0], sizes = [1, 32], strides = [1, 1]} : vector<5x32xf32> to vector<1x32xf32>
    %119 = vector.broadcast %118 : vector<1x32xf32> to vector<16x32xf32>
    %120 = arith.mulf %119, %117 : vector<16x32xf32>
    %121 = arith.addf %116, %120 : vector<16x32xf32>
    %c3_63 = arith.constant 3 : index
    %c0_64 = arith.constant 0 : index
    %122 = tpu.strided_load %arg17[%c3_63, %c0_64] {strides = array<i32: 2, 1>} : memref<36x32xf32, #tpu.memory_space<vmem>>, vector<16x32xf32>
    %123 = vector.extract_strided_slice %107 {offsets = [3, 0], sizes = [1, 32], strides = [1, 1]} : vector<5x32xf32> to vector<1x32xf32>
    %124 = vector.broadcast %123 : vector<1x32xf32> to vector<16x32xf32>
    %125 = arith.mulf %124, %122 : vector<16x32xf32>
    %126 = arith.addf %121, %125 : vector<16x32xf32>
    %c4_65 = arith.constant 4 : index
    %c0_66 = arith.constant 0 : index
    %127 = tpu.strided_load %arg17[%c4_65, %c0_66] {strides = array<i32: 2, 1>} : memref<36x32xf32, #tpu.memory_space<vmem>>, vector<16x32xf32>
    %128 = vector.extract_strided_slice %107 {offsets = [4, 0], sizes = [1, 32], strides = [1, 1]} : vector<5x32xf32> to vector<1x32xf32>
    %129 = vector.broadcast %128 : vector<1x32xf32> to vector<16x32xf32>
    %130 = arith.mulf %129, %127 : vector<16x32xf32>
    %131 = arith.addf %126, %130 : vector<16x32xf32>
    %c1_67 = arith.constant 1 : index
    %c0_68 = arith.constant 0 : index
    %c0_69 = arith.constant 0 : index
    %132 = vector.load %arg8[%c1_67, %c0_68, %c0_69] : memref<4x1x32xf32, #tpu.memory_space<vmem>>, vector<1x1x32xf32>
    %133 = vector.shape_cast %132 : vector<1x1x32xf32> to vector<1x32xf32>
    %134 = vector.broadcast %133 : vector<1x32xf32> to vector<16x32xf32>
    %135 = arith.addf %131, %134 : vector<16x32xf32>
    %c1_70 = arith.constant 1 : index
    %c0_71 = arith.constant 0 : index
    %c0_72 = arith.constant 0 : index
    %136 = vector.load %arg9[%c1_70, %c0_71, %c0_72] : memref<4x1x32xf32, #tpu.memory_space<vmem>>, vector<1x1x32xf32>
    %137 = vector.shape_cast %136 : vector<1x1x32xf32> to vector<1x32xf32>
    %c1_73 = arith.constant 1 : index
    %c0_74 = arith.constant 0 : index
    %c0_75 = arith.constant 0 : index
    %138 = vector.load %arg10[%c1_73, %c0_74, %c0_75] : memref<4x1x32xf32, #tpu.memory_space<vmem>>, vector<1x1x32xf32>
    %139 = vector.shape_cast %138 : vector<1x1x32xf32> to vector<1x32xf32>
    %140 = vector.shape_cast %135 : vector<16x32xf32> to vector<1x16x32xf32>
    %cst_76 = arith.constant dense<0.000000e+00> : vector<1xf32>
    %141 = vector.multi_reduction <add>, %140, %cst_76 [1, 2] : vector<1x16x32xf32> to vector<1xf32>
    %142 = vector.shape_cast %141 : vector<1xf32> to vector<1x1x1xf32>
    %143 = vector.extract %142[0, 0, 0] : f32 from vector<1x1x1xf32>
    %144 = arith.mulf %135, %135 : vector<16x32xf32>
    %145 = vector.shape_cast %144 : vector<16x32xf32> to vector<1x16x32xf32>
    %cst_77 = arith.constant dense<0.000000e+00> : vector<1xf32>
    %146 = vector.multi_reduction <add>, %145, %cst_77 [1, 2] : vector<1x16x32xf32> to vector<1xf32>
    %147 = vector.shape_cast %146 : vector<1xf32> to vector<1x1x1xf32>
    %148 = vector.extract %147[0, 0, 0] : f32 from vector<1x1x1xf32>
    %cst_78 = arith.constant 5.120000e+02 : f32
    %149 = arith.divf %143, %cst_78 : f32
    %cst_79 = arith.constant 5.120000e+02 : f32
    %150 = arith.divf %148, %cst_79 : f32
    %151 = arith.mulf %149, %149 : f32
    %152 = arith.subf %150, %151 : f32
    %cst_80 = arith.constant 0.000000e+00 : f32
    %153 = arith.maximumf %152, %cst_80 : f32
    %154 = vector.broadcast %149 : f32 to vector<16x32xf32>
    %155 = arith.subf %135, %154 : vector<16x32xf32>
    %cst_81 = arith.constant 9.99999993E-9 : f32
    %156 = arith.addf %153, %cst_81 : f32
    %157 = math.rsqrt %156 : f32
    %158 = vector.broadcast %157 : f32 to vector<16x32xf32>
    %159 = arith.mulf %155, %158 : vector<16x32xf32>
    %160 = vector.broadcast %137 : vector<1x32xf32> to vector<16x32xf32>
    %161 = arith.mulf %159, %160 : vector<16x32xf32>
    %162 = vector.broadcast %139 : vector<1x32xf32> to vector<16x32xf32>
    %163 = arith.addf %161, %162 : vector<16x32xf32>
    %c0_82 = arith.constant 0 : index
    %c0_83 = arith.constant 0 : index
    %164 = vector.load %arg18[%c0_82, %c0_83] : memref<20x32xf32, #tpu.memory_space<vmem>>, vector<2x32xf32>
    tpu.vector_store %arg18[%c0_82, %c0_83], %0 {strides = array<i32>} : memref<20x32xf32, #tpu.memory_space<vmem>>, vector<2x32xf32>,
    %c18 = arith.constant 18 : index
    %c0_84 = arith.constant 0 : index
    %165 = vector.load %arg18[%c18, %c0_84] : memref<20x32xf32, #tpu.memory_space<vmem>>, vector<2x32xf32>
    tpu.vector_store %arg18[%c18, %c0_84], %0 {strides = array<i32>} : memref<20x32xf32, #tpu.memory_space<vmem>>, vector<2x32xf32>,
    %c2_85 = arith.constant 2 : index
    %c0_86 = arith.constant 0 : index
    %166 = vector.load %arg18[%c2_85, %c0_86] : memref<20x32xf32, #tpu.memory_space<vmem>>, vector<16x32xf32>
    tpu.vector_store %arg18[%c2_85, %c0_86], %163 {strides = array<i32>} : memref<20x32xf32, #tpu.memory_space<vmem>>, vector<16x32xf32>,
    %c2_87 = arith.constant 2 : index
    %c0_88 = arith.constant 0 : index
    %c0_89 = arith.constant 0 : index
    %167 = vector.load %arg7[%c2_87, %c0_88, %c0_89] : memref<4x5x32xf32, #tpu.memory_space<vmem>>, vector<1x5x32xf32>
    %168 = vector.shape_cast %167 : vector<1x5x32xf32> to vector<5x32xf32>
    %c0_90 = arith.constant 0 : index
    %c0_91 = arith.constant 0 : index
    %169 = tpu.strided_load %arg18[%c0_90, %c0_91] {strides = array<i32: 2, 1>} : memref<20x32xf32, #tpu.memory_space<vmem>>, vector<8x32xf32>
    %170 = vector.extract_strided_slice %168 {offsets = [0, 0], sizes = [1, 32], strides = [1, 1]} : vector<5x32xf32> to vector<1x32xf32>
    %171 = vector.broadcast %170 : vector<1x32xf32> to vector<8x32xf32>
    %172 = arith.mulf %171, %169 : vector<8x32xf32>
    %c1_92 = arith.constant 1 : index
    %c0_93 = arith.constant 0 : index
    %173 = tpu.strided_load %arg18[%c1_92, %c0_93] {strides = array<i32: 2, 1>} : memref<20x32xf32, #tpu.memory_space<vmem>>, vector<8x32xf32>
    %174 = vector.extract_strided_slice %168 {offsets = [1, 0], sizes = [1, 32], strides = [1, 1]} : vector<5x32xf32> to vector<1x32xf32>
    %175 = vector.broadcast %174 : vector<1x32xf32> to vector<8x32xf32>
    %176 = arith.mulf %175, %173 : vector<8x32xf32>
    %177 = arith.addf %172, %176 : vector<8x32xf32>
    %c2_94 = arith.constant 2 : index
    %c0_95 = arith.constant 0 : index
    %178 = tpu.strided_load %arg18[%c2_94, %c0_95] {strides = array<i32: 2, 1>} : memref<20x32xf32, #tpu.memory_space<vmem>>, vector<8x32xf32>
    %179 = vector.extract_strided_slice %168 {offsets = [2, 0], sizes = [1, 32], strides = [1, 1]} : vector<5x32xf32> to vector<1x32xf32>
    %180 = vector.broadcast %179 : vector<1x32xf32> to vector<8x32xf32>
    %181 = arith.mulf %180, %178 : vector<8x32xf32>
    %182 = arith.addf %177, %181 : vector<8x32xf32>
    %c3_96 = arith.constant 3 : index
    %c0_97 = arith.constant 0 : index
    %183 = tpu.strided_load %arg18[%c3_96, %c0_97] {strides = array<i32: 2, 1>} : memref<20x32xf32, #tpu.memory_space<vmem>>, vector<8x32xf32>
    %184 = vector.extract_strided_slice %168 {offsets = [3, 0], sizes = [1, 32], strides = [1, 1]} : vector<5x32xf32> to vector<1x32xf32>
    %185 = vector.broadcast %184 : vector<1x32xf32> to vector<8x32xf32>
    %186 = arith.mulf %185, %183 : vector<8x32xf32>
    %187 = arith.addf %182, %186 : vector<8x32xf32>
    %c4_98 = arith.constant 4 : index
    %c0_99 = arith.constant 0 : index
    %188 = tpu.strided_load %arg18[%c4_98, %c0_99] {strides = array<i32: 2, 1>} : memref<20x32xf32, #tpu.memory_space<vmem>>, vector<8x32xf32>
    %189 = vector.extract_strided_slice %168 {offsets = [4, 0], sizes = [1, 32], strides = [1, 1]} : vector<5x32xf32> to vector<1x32xf32>
    %190 = vector.broadcast %189 : vector<1x32xf32> to vector<8x32xf32>
    %191 = arith.mulf %190, %188 : vector<8x32xf32>
    %192 = arith.addf %187, %191 : vector<8x32xf32>
    %c2_100 = arith.constant 2 : index
    %c0_101 = arith.constant 0 : index
    %c0_102 = arith.constant 0 : index
    %193 = vector.load %arg8[%c2_100, %c0_101, %c0_102] : memref<4x1x32xf32, #tpu.memory_space<vmem>>, vector<1x1x32xf32>
    %194 = vector.shape_cast %193 : vector<1x1x32xf32> to vector<1x32xf32>
    %195 = vector.broadcast %194 : vector<1x32xf32> to vector<8x32xf32>
    %196 = arith.addf %192, %195 : vector<8x32xf32>
    %c2_103 = arith.constant 2 : index
    %c0_104 = arith.constant 0 : index
    %c0_105 = arith.constant 0 : index
    %197 = vector.load %arg9[%c2_103, %c0_104, %c0_105] : memref<4x1x32xf32, #tpu.memory_space<vmem>>, vector<1x1x32xf32>
    %198 = vector.shape_cast %197 : vector<1x1x32xf32> to vector<1x32xf32>
    %c2_106 = arith.constant 2 : index
    %c0_107 = arith.constant 0 : index
    %c0_108 = arith.constant 0 : index
    %199 = vector.load %arg10[%c2_106, %c0_107, %c0_108] : memref<4x1x32xf32, #tpu.memory_space<vmem>>, vector<1x1x32xf32>
    %200 = vector.shape_cast %199 : vector<1x1x32xf32> to vector<1x32xf32>
    %201 = vector.shape_cast %196 : vector<8x32xf32> to vector<1x8x32xf32>
    %cst_109 = arith.constant dense<0.000000e+00> : vector<1xf32>
    %202 = vector.multi_reduction <add>, %201, %cst_109 [1, 2] : vector<1x8x32xf32> to vector<1xf32>
    %203 = vector.shape_cast %202 : vector<1xf32> to vector<1x1x1xf32>
    %204 = vector.extract %203[0, 0, 0] : f32 from vector<1x1x1xf32>
    %205 = arith.mulf %196, %196 : vector<8x32xf32>
    %206 = vector.shape_cast %205 : vector<8x32xf32> to vector<1x8x32xf32>
    %cst_110 = arith.constant dense<0.000000e+00> : vector<1xf32>
    %207 = vector.multi_reduction <add>, %206, %cst_110 [1, 2] : vector<1x8x32xf32> to vector<1xf32>
    %208 = vector.shape_cast %207 : vector<1xf32> to vector<1x1x1xf32>
    %209 = vector.extract %208[0, 0, 0] : f32 from vector<1x1x1xf32>
    %cst_111 = arith.constant 2.560000e+02 : f32
    %210 = arith.divf %204, %cst_111 : f32
    %cst_112 = arith.constant 2.560000e+02 : f32
    %211 = arith.divf %209, %cst_112 : f32
    %212 = arith.mulf %210, %210 : f32
    %213 = arith.subf %211, %212 : f32
    %cst_113 = arith.constant 0.000000e+00 : f32
    %214 = arith.maximumf %213, %cst_113 : f32
    %215 = vector.broadcast %210 : f32 to vector<8x32xf32>
    %216 = arith.subf %196, %215 : vector<8x32xf32>
    %cst_114 = arith.constant 9.99999993E-9 : f32
    %217 = arith.addf %214, %cst_114 : f32
    %218 = math.rsqrt %217 : f32
    %219 = vector.broadcast %218 : f32 to vector<8x32xf32>
    %220 = arith.mulf %216, %219 : vector<8x32xf32>
    %221 = vector.broadcast %198 : vector<1x32xf32> to vector<8x32xf32>
    %222 = arith.mulf %220, %221 : vector<8x32xf32>
    %223 = vector.broadcast %200 : vector<1x32xf32> to vector<8x32xf32>
    %224 = arith.addf %222, %223 : vector<8x32xf32>
    %c0_115 = arith.constant 0 : index
    %c0_116 = arith.constant 0 : index
    %225 = vector.load %arg19[%c0_115, %c0_116] : memref<12x32xf32, #tpu.memory_space<vmem>>, vector<2x32xf32>
    tpu.vector_store %arg19[%c0_115, %c0_116], %0 {strides = array<i32>} : memref<12x32xf32, #tpu.memory_space<vmem>>, vector<2x32xf32>,
    %c10 = arith.constant 10 : index
    %c0_117 = arith.constant 0 : index
    %226 = vector.load %arg19[%c10, %c0_117] : memref<12x32xf32, #tpu.memory_space<vmem>>, vector<2x32xf32>
    tpu.vector_store %arg19[%c10, %c0_117], %0 {strides = array<i32>} : memref<12x32xf32, #tpu.memory_space<vmem>>, vector<2x32xf32>,
    %c2_118 = arith.constant 2 : index
    %c0_119 = arith.constant 0 : index
    %227 = vector.load %arg19[%c2_118, %c0_119] : memref<12x32xf32, #tpu.memory_space<vmem>>, vector<8x32xf32>
    tpu.vector_store %arg19[%c2_118, %c0_119], %224 {strides = array<i32>} : memref<12x32xf32, #tpu.memory_space<vmem>>, vector<8x32xf32>,
    %c3_120 = arith.constant 3 : index
    %c0_121 = arith.constant 0 : index
    %c0_122 = arith.constant 0 : index
    %228 = vector.load %arg7[%c3_120, %c0_121, %c0_122] : memref<4x5x32xf32, #tpu.memory_space<vmem>>, vector<1x5x32xf32>
    %229 = vector.shape_cast %228 : vector<1x5x32xf32> to vector<5x32xf32>
    %c0_123 = arith.constant 0 : index
    %c0_124 = arith.constant 0 : index
    %230 = tpu.strided_load %arg19[%c0_123, %c0_124] {strides = array<i32: 2, 1>} : memref<12x32xf32, #tpu.memory_space<vmem>>, vector<4x32xf32>
    %231 = vector.extract_strided_slice %229 {offsets = [0, 0], sizes = [1, 32], strides = [1, 1]} : vector<5x32xf32> to vector<1x32xf32>
    %232 = vector.broadcast %231 : vector<1x32xf32> to vector<4x32xf32>
    %233 = arith.mulf %232, %230 : vector<4x32xf32>
    %c1_125 = arith.constant 1 : index
    %c0_126 = arith.constant 0 : index
    %234 = tpu.strided_load %arg19[%c1_125, %c0_126] {strides = array<i32: 2, 1>} : memref<12x32xf32, #tpu.memory_space<vmem>>, vector<4x32xf32>
    %235 = vector.extract_strided_slice %229 {offsets = [1, 0], sizes = [1, 32], strides = [1, 1]} : vector<5x32xf32> to vector<1x32xf32>
    %236 = vector.broadcast %235 : vector<1x32xf32> to vector<4x32xf32>
    %237 = arith.mulf %236, %234 : vector<4x32xf32>
    %238 = arith.addf %233, %237 : vector<4x32xf32>
    %c2_127 = arith.constant 2 : index
    %c0_128 = arith.constant 0 : index
    %239 = tpu.strided_load %arg19[%c2_127, %c0_128] {strides = array<i32: 2, 1>} : memref<12x32xf32, #tpu.memory_space<vmem>>, vector<4x32xf32>
    %240 = vector.extract_strided_slice %229 {offsets = [2, 0], sizes = [1, 32], strides = [1, 1]} : vector<5x32xf32> to vector<1x32xf32>
    %241 = vector.broadcast %240 : vector<1x32xf32> to vector<4x32xf32>
    %242 = arith.mulf %241, %239 : vector<4x32xf32>
    %243 = arith.addf %238, %242 : vector<4x32xf32>
    %c3_129 = arith.constant 3 : index
    %c0_130 = arith.constant 0 : index
    %244 = tpu.strided_load %arg19[%c3_129, %c0_130] {strides = array<i32: 2, 1>} : memref<12x32xf32, #tpu.memory_space<vmem>>, vector<4x32xf32>
    %245 = vector.extract_strided_slice %229 {offsets = [3, 0], sizes = [1, 32], strides = [1, 1]} : vector<5x32xf32> to vector<1x32xf32>
    %246 = vector.broadcast %245 : vector<1x32xf32> to vector<4x32xf32>
    %247 = arith.mulf %246, %244 : vector<4x32xf32>
    %248 = arith.addf %243, %247 : vector<4x32xf32>
    %c4_131 = arith.constant 4 : index
    %c0_132 = arith.constant 0 : index
    %249 = tpu.strided_load %arg19[%c4_131, %c0_132] {strides = array<i32: 2, 1>} : memref<12x32xf32, #tpu.memory_space<vmem>>, vector<4x32xf32>
    %250 = vector.extract_strided_slice %229 {offsets = [4, 0], sizes = [1, 32], strides = [1, 1]} : vector<5x32xf32> to vector<1x32xf32>
    %251 = vector.broadcast %250 : vector<1x32xf32> to vector<4x32xf32>
    %252 = arith.mulf %251, %249 : vector<4x32xf32>
    %253 = arith.addf %248, %252 : vector<4x32xf32>
    %c3_133 = arith.constant 3 : index
    %c0_134 = arith.constant 0 : index
    %c0_135 = arith.constant 0 : index
    %254 = vector.load %arg8[%c3_133, %c0_134, %c0_135] : memref<4x1x32xf32, #tpu.memory_space<vmem>>, vector<1x1x32xf32>
    %255 = vector.shape_cast %254 : vector<1x1x32xf32> to vector<1x32xf32>
    %256 = vector.broadcast %255 : vector<1x32xf32> to vector<4x32xf32>
    %257 = arith.addf %253, %256 : vector<4x32xf32>
    %c3_136 = arith.constant 3 : index
    %c0_137 = arith.constant 0 : index
    %c0_138 = arith.constant 0 : index
    %258 = vector.load %arg9[%c3_136, %c0_137, %c0_138] : memref<4x1x32xf32, #tpu.memory_space<vmem>>, vector<1x1x32xf32>
    %259 = vector.shape_cast %258 : vector<1x1x32xf32> to vector<1x32xf32>
    %c3_139 = arith.constant 3 : index
    %c0_140 = arith.constant 0 : index
    %c0_141 = arith.constant 0 : index
    %260 = vector.load %arg10[%c3_139, %c0_140, %c0_141] : memref<4x1x32xf32, #tpu.memory_space<vmem>>, vector<1x1x32xf32>
    %261 = vector.shape_cast %260 : vector<1x1x32xf32> to vector<1x32xf32>
    %262 = vector.shape_cast %257 : vector<4x32xf32> to vector<1x4x32xf32>
    %cst_142 = arith.constant dense<0.000000e+00> : vector<1xf32>
    %263 = vector.multi_reduction <add>, %262, %cst_142 [1, 2] : vector<1x4x32xf32> to vector<1xf32>
    %264 = vector.shape_cast %263 : vector<1xf32> to vector<1x1x1xf32>
    %265 = vector.extract %264[0, 0, 0] : f32 from vector<1x1x1xf32>
    %266 = arith.mulf %257, %257 : vector<4x32xf32>
    %267 = vector.shape_cast %266 : vector<4x32xf32> to vector<1x4x32xf32>
    %cst_143 = arith.constant dense<0.000000e+00> : vector<1xf32>
    %268 = vector.multi_reduction <add>, %267, %cst_143 [1, 2] : vector<1x4x32xf32> to vector<1xf32>
    %269 = vector.shape_cast %268 : vector<1xf32> to vector<1x1x1xf32>
    %270 = vector.extract %269[0, 0, 0] : f32 from vector<1x1x1xf32>
    %cst_144 = arith.constant 1.280000e+02 : f32
    %271 = arith.divf %265, %cst_144 : f32
    %cst_145 = arith.constant 1.280000e+02 : f32
    %272 = arith.divf %270, %cst_145 : f32
    %273 = arith.mulf %271, %271 : f32
    %274 = arith.subf %272, %273 : f32
    %cst_146 = arith.constant 0.000000e+00 : f32
    %275 = arith.maximumf %274, %cst_146 : f32
    %276 = vector.broadcast %271 : f32 to vector<4x32xf32>
    %277 = arith.subf %257, %276 : vector<4x32xf32>
    %cst_147 = arith.constant 9.99999993E-9 : f32
    %278 = arith.addf %275, %cst_147 : f32
    %279 = math.rsqrt %278 : f32
    %280 = vector.broadcast %279 : f32 to vector<4x32xf32>
    %281 = arith.mulf %277, %280 : vector<4x32xf32>
    %282 = vector.broadcast %259 : vector<1x32xf32> to vector<4x32xf32>
    %283 = arith.mulf %281, %282 : vector<4x32xf32>
    %284 = vector.broadcast %261 : vector<1x32xf32> to vector<4x32xf32>
    %285 = arith.addf %283, %284 : vector<4x32xf32>
    %c0_148 = arith.constant 0 : index
    %c0_149 = arith.constant 0 : index
    %286 = vector.load %arg20[%c0_148, %c0_149] : memref<8x32xf32, #tpu.memory_space<vmem>>, vector<2x32xf32>
    tpu.vector_store %arg20[%c0_148, %c0_149], %0 {strides = array<i32>} : memref<8x32xf32, #tpu.memory_space<vmem>>, vector<2x32xf32>,
    %c6 = arith.constant 6 : index
    %c0_150 = arith.constant 0 : index
    %287 = vector.load %arg20[%c6, %c0_150] : memref<8x32xf32, #tpu.memory_space<vmem>>, vector<2x32xf32>
    tpu.vector_store %arg20[%c6, %c0_150], %0 {strides = array<i32>} : memref<8x32xf32, #tpu.memory_space<vmem>>, vector<2x32xf32>,
    %c2_151 = arith.constant 2 : index
    %c0_152 = arith.constant 0 : index
    %288 = vector.load %arg20[%c2_151, %c0_152] : memref<8x32xf32, #tpu.memory_space<vmem>>, vector<4x32xf32>
    tpu.vector_store %arg20[%c2_151, %c0_152], %285 {strides = array<i32>} : memref<8x32xf32, #tpu.memory_space<vmem>>, vector<4x32xf32>,
    %c2_153 = arith.constant 2 : index
    %c0_154 = arith.constant 0 : index
    %289 = vector.load %arg20[%c2_153, %c0_154] : memref<8x32xf32, #tpu.memory_space<vmem>>, vector<4x32xf32>
    %c2_155 = arith.constant 2 : index
    %c0_156 = arith.constant 0 : index
    %290 = tpu.strided_load %arg19[%c2_155, %c0_156] {strides = array<i32: 2, 1>} : memref<12x32xf32, #tpu.memory_space<vmem>>, vector<4x32xf32>
    %291 = arith.addf %290, %289 : vector<4x32xf32>
    %c2_157 = arith.constant 2 : index
    %c0_158 = arith.constant 0 : index
    %292 = tpu.strided_load %arg19[%c2_157, %c0_158] {strides = array<i32: 2, 1>} : memref<12x32xf32, #tpu.memory_space<vmem>>, vector<4x32xf32>
    tpu.strided_store %arg19[%c2_157, %c0_158], %291 {strides = array<i32: 2, 1>} : memref<12x32xf32, #tpu.memory_space<vmem>>, vector<4x32xf32>
    %c3_159 = arith.constant 3 : index
    %c0_160 = arith.constant 0 : index
    %293 = tpu.strided_load %arg19[%c3_159, %c0_160] {strides = array<i32: 2, 1>} : memref<12x32xf32, #tpu.memory_space<vmem>>, vector<4x32xf32>
    %294 = arith.addf %293, %289 : vector<4x32xf32>
    %c3_161 = arith.constant 3 : index
    %c0_162 = arith.constant 0 : index
    %295 = tpu.strided_load %arg19[%c3_161, %c0_162] {strides = array<i32: 2, 1>} : memref<12x32xf32, #tpu.memory_space<vmem>>, vector<4x32xf32>
    tpu.strided_store %arg19[%c3_161, %c0_162], %294 {strides = array<i32: 2, 1>} : memref<12x32xf32, #tpu.memory_space<vmem>>, vector<4x32xf32>
    %c2_163 = arith.constant 2 : index
    %c0_164 = arith.constant 0 : index
    %296 = vector.load %arg19[%c2_163, %c0_164] : memref<12x32xf32, #tpu.memory_space<vmem>>, vector<8x32xf32>
    %c2_165 = arith.constant 2 : index
    %c0_166 = arith.constant 0 : index
    %297 = tpu.strided_load %arg18[%c2_165, %c0_166] {strides = array<i32: 2, 1>} : memref<20x32xf32, #tpu.memory_space<vmem>>, vector<8x32xf32>
    %298 = arith.addf %297, %296 : vector<8x32xf32>
    %c2_167 = arith.constant 2 : index
    %c0_168 = arith.constant 0 : index
    %299 = tpu.strided_load %arg18[%c2_167, %c0_168] {strides = array<i32: 2, 1>} : memref<20x32xf32, #tpu.memory_space<vmem>>, vector<8x32xf32>
    tpu.strided_store %arg18[%c2_167, %c0_168], %298 {strides = array<i32: 2, 1>} : memref<20x32xf32, #tpu.memory_space<vmem>>, vector<8x32xf32>
    %c3_169 = arith.constant 3 : index
    %c0_170 = arith.constant 0 : index
    %300 = tpu.strided_load %arg18[%c3_169, %c0_170] {strides = array<i32: 2, 1>} : memref<20x32xf32, #tpu.memory_space<vmem>>, vector<8x32xf32>
    %301 = arith.addf %300, %296 : vector<8x32xf32>
    %c3_171 = arith.constant 3 : index
    %c0_172 = arith.constant 0 : index
    %302 = tpu.strided_load %arg18[%c3_171, %c0_172] {strides = array<i32: 2, 1>} : memref<20x32xf32, #tpu.memory_space<vmem>>, vector<8x32xf32>
    tpu.strided_store %arg18[%c3_171, %c0_172], %301 {strides = array<i32: 2, 1>} : memref<20x32xf32, #tpu.memory_space<vmem>>, vector<8x32xf32>
    %c2_173 = arith.constant 2 : index
    %c0_174 = arith.constant 0 : index
    %303 = vector.load %arg18[%c2_173, %c0_174] : memref<20x32xf32, #tpu.memory_space<vmem>>, vector<16x32xf32>
    %c2_175 = arith.constant 2 : index
    %c0_176 = arith.constant 0 : index
    %304 = tpu.strided_load %arg17[%c2_175, %c0_176] {strides = array<i32: 2, 1>} : memref<36x32xf32, #tpu.memory_space<vmem>>, vector<16x32xf32>
    %305 = arith.addf %304, %303 : vector<16x32xf32>
    %c2_177 = arith.constant 2 : index
    %c0_178 = arith.constant 0 : index
    %306 = tpu.strided_load %arg17[%c2_177, %c0_178] {strides = array<i32: 2, 1>} : memref<36x32xf32, #tpu.memory_space<vmem>>, vector<16x32xf32>
    tpu.strided_store %arg17[%c2_177, %c0_178], %305 {strides = array<i32: 2, 1>} : memref<36x32xf32, #tpu.memory_space<vmem>>, vector<16x32xf32>
    %c3_179 = arith.constant 3 : index
    %c0_180 = arith.constant 0 : index
    %307 = tpu.strided_load %arg17[%c3_179, %c0_180] {strides = array<i32: 2, 1>} : memref<36x32xf32, #tpu.memory_space<vmem>>, vector<16x32xf32>
    %308 = arith.addf %307, %303 : vector<16x32xf32>
    %c3_181 = arith.constant 3 : index
    %c0_182 = arith.constant 0 : index
    %309 = tpu.strided_load %arg17[%c3_181, %c0_182] {strides = array<i32: 2, 1>} : memref<36x32xf32, #tpu.memory_space<vmem>>, vector<16x32xf32>
    tpu.strided_store %arg17[%c3_181, %c0_182], %308 {strides = array<i32: 2, 1>} : memref<36x32xf32, #tpu.memory_space<vmem>>, vector<16x32xf32>
    %c2_183 = arith.constant 2 : index
    %c0_184 = arith.constant 0 : index
    %310 = vector.load %arg17[%c2_183, %c0_184] : memref<36x32xf32, #tpu.memory_space<vmem>>, vector<32x32xf32>
    %c0_185 = arith.constant 0 : index
    %c0_186 = arith.constant 0 : index
    %311 = vector.load %arg11[%c0_185, %c0_186] : memref<1x32xf32, #tpu.memory_space<vmem>>, vector<1x32xf32>
    %c0_187 = arith.constant 0 : index
    %c0_188 = arith.constant 0 : index
    %312 = vector.load %arg12[%c0_187, %c0_188] : memref<1x32xf32, #tpu.memory_space<vmem>>, vector<1x32xf32>
    %313 = vector.shape_cast %310 : vector<32x32xf32> to vector<1x32x32xf32>
    %cst_189 = arith.constant dense<0.000000e+00> : vector<1xf32>
    %314 = vector.multi_reduction <add>, %313, %cst_189 [1, 2] : vector<1x32x32xf32> to vector<1xf32>
    %315 = vector.shape_cast %314 : vector<1xf32> to vector<1x1x1xf32>
    %316 = vector.extract %315[0, 0, 0] : f32 from vector<1x1x1xf32>
    %317 = arith.mulf %310, %310 : vector<32x32xf32>
    %318 = vector.shape_cast %317 : vector<32x32xf32> to vector<1x32x32xf32>
    %cst_190 = arith.constant dense<0.000000e+00> : vector<1xf32>
    %319 = vector.multi_reduction <add>, %318, %cst_190 [1, 2] : vector<1x32x32xf32> to vector<1xf32>
    %320 = vector.shape_cast %319 : vector<1xf32> to vector<1x1x1xf32>
    %321 = vector.extract %320[0, 0, 0] : f32 from vector<1x1x1xf32>
    %cst_191 = arith.constant 1.024000e+03 : f32
    %322 = arith.divf %316, %cst_191 : f32
    %cst_192 = arith.constant 1.024000e+03 : f32
    %323 = arith.divf %321, %cst_192 : f32
    %324 = arith.mulf %322, %322 : f32
    %325 = arith.subf %323, %324 : f32
    %cst_193 = arith.constant 0.000000e+00 : f32
    %326 = arith.maximumf %325, %cst_193 : f32
    %327 = vector.broadcast %322 : f32 to vector<32x32xf32>
    %328 = arith.subf %310, %327 : vector<32x32xf32>
    %cst_194 = arith.constant 9.99999993E-9 : f32
    %329 = arith.addf %326, %cst_194 : f32
    %330 = math.rsqrt %329 : f32
    %331 = vector.broadcast %330 : f32 to vector<32x32xf32>
    %332 = arith.mulf %328, %331 : vector<32x32xf32>
    %333 = vector.broadcast %311 : vector<1x32xf32> to vector<32x32xf32>
    %334 = arith.mulf %332, %333 : vector<32x32xf32>
    %335 = vector.broadcast %312 : vector<1x32xf32> to vector<32x32xf32>
    %336 = arith.addf %334, %335 : vector<32x32xf32>
    %cst_195 = arith.constant 0.000000e+00 : f32
    %337 = vector.broadcast %cst_195 : f32 to vector<32x32xf32>
    %338 = arith.cmpf ogt, %336, %337 : vector<32x32xf32>
    %c1_196 = arith.constant 1 : index
    %339 = memref.load %arg1[%c1_196] : memref<2xf32, #tpu.memory_space<smem>>
    %340 = vector.broadcast %339 : f32 to vector<32x32xf32>
    %341 = arith.mulf %340, %336 : vector<32x32xf32>
    %342 = arith.select %338, %336, %341 : vector<32x32xi1>, vector<32x32xf32>
    %343 = arith.truncf %342 : vector<32x32xf32> to vector<32x32xbf16>
    %c0_197 = arith.constant 0 : index
    %c0_198 = arith.constant 0 : index
    %344 = vector.load %arg13[%c0_197, %c0_198] : memref<32x16xf32, #tpu.memory_space<vmem>>, vector<32x16xf32>
    %345 = arith.truncf %344 : vector<32x16xf32> to vector<32x16xbf16>
    %cst_199 = arith.constant dense<0.000000e+00> : vector<32x16xf32>
    %346 = tpu.matmul %343, %345, %cst_199 {dimension_numbers = #tpu.dot_dimension_numbers<[1], [0], [0], [1], [0, 0, 1, 1], [], []>} : vector<32x32xbf16>, vector<32x16xbf16>, vector<32x16xf32> -> vector<32x16xf32>
    %c0_200 = arith.constant 0 : index
    %c0_201 = arith.constant 0 : index
    %347 = vector.load %arg14[%c0_200, %c0_201] : memref<1x16xf32, #tpu.memory_space<vmem>>, vector<1x16xf32>
    %348 = vector.broadcast %347 : vector<1x16xf32> to vector<32x16xf32>
    %349 = arith.addf %346, %348 : vector<32x16xf32>
    %c0_202 = arith.constant 0 : index
    %c0_203 = arith.constant 0 : index
    %c0_204 = arith.constant 0 : index
    %350 = vector.load %arg2[%c0_202, %c0_203, %c0_204] : memref<1x32x16xf32, #tpu.memory_space<vmem>>, vector<1x32x16xf32>
    %351 = vector.shape_cast %350 : vector<1x32x16xf32> to vector<32x16xf32>
    %352 = arith.addf %349, %351 : vector<32x16xf32>
    %c0_205 = arith.constant 0 : index
    %c0_206 = arith.constant 0 : index
    %c0_207 = arith.constant 0 : index
    %353 = vector.load %arg15[%c0_205, %c0_206, %c0_207] : memref<1x32x16xf32, #tpu.memory_space<vmem>>, vector<1x32x16xf32>
    %354 = vector.shape_cast %353 : vector<1x32x16xf32> to vector<32x16xf32>
    %355 = vector.shape_cast %352 : vector<32x16xf32> to vector<1x32x16xf32>
    tpu.vector_store %arg15[%c0_205, %c0_206, %c0_207], %355 {strides = array<i32>} : memref<1x32x16xf32, #tpu.memory_space<vmem>>, vector<1x32x16xf32>,
    return
  }
  func.func @transform_0(%arg0: i32) -> i32 {
    %c0_i32 = arith.constant 0 : i32
    %c0_i32_0 = arith.constant 0 : i32
    return %c0_i32 : i32
  }
  func.func @transform_1(%arg0: i32) -> (i32, i32, i32) {
    %c0_i32 = arith.constant 0 : i32
    %c0_i32_0 = arith.constant 0 : i32
    %c0_i32_1 = arith.constant 0 : i32
    return %arg0, %c0_i32, %c0_i32_0 : i32, i32, i32
  }
  func.func @transform_2(%arg0: i32) -> (i32, i32) {
    %c0_i32 = arith.constant 0 : i32
    %c0_i32_0 = arith.constant 0 : i32
    %c0_i32_1 = arith.constant 0 : i32
    return %c0_i32, %c0_i32_0 : i32, i32
  }
  func.func @transform_3(%arg0: i32) -> (i32, i32) {
    %c0_i32 = arith.constant 0 : i32
    %c0_i32_0 = arith.constant 0 : i32
    %c0_i32_1 = arith.constant 0 : i32
    return %c0_i32, %c0_i32_0 : i32, i32
  }
  func.func @transform_4(%arg0: i32) -> (i32, i32) {
    %c0_i32 = arith.constant 0 : i32
    %c0_i32_0 = arith.constant 0 : i32
    %c0_i32_1 = arith.constant 0 : i32
    return %c0_i32, %c0_i32_0 : i32, i32
  }
  func.func @transform_5(%arg0: i32) -> (i32, i32) {
    %c0_i32 = arith.constant 0 : i32
    %c0_i32_0 = arith.constant 0 : i32
    %c0_i32_1 = arith.constant 0 : i32
    return %c0_i32, %c0_i32_0 : i32, i32
  }
  func.func @transform_6(%arg0: i32) -> (i32, i32, i32) {
    %c0_i32 = arith.constant 0 : i32
    %c0_i32_0 = arith.constant 0 : i32
    %c0_i32_1 = arith.constant 0 : i32
    %c0_i32_2 = arith.constant 0 : i32
    return %c0_i32, %c0_i32_0, %c0_i32_1 : i32, i32, i32
  }
  func.func @transform_7(%arg0: i32) -> (i32, i32, i32) {
    %c0_i32 = arith.constant 0 : i32
    %c0_i32_0 = arith.constant 0 : i32
    %c0_i32_1 = arith.constant 0 : i32
    %c0_i32_2 = arith.constant 0 : i32
    return %c0_i32, %c0_i32_0, %c0_i32_1 : i32, i32, i32
  }
  func.func @transform_8(%arg0: i32) -> (i32, i32, i32) {
    %c0_i32 = arith.constant 0 : i32
    %c0_i32_0 = arith.constant 0 : i32
    %c0_i32_1 = arith.constant 0 : i32
    %c0_i32_2 = arith.constant 0 : i32
    return %c0_i32, %c0_i32_0, %c0_i32_1 : i32, i32, i32
  }
  func.func @transform_9(%arg0: i32) -> (i32, i32, i32) {
    %c0_i32 = arith.constant 0 : i32
    %c0_i32_0 = arith.constant 0 : i32
    %c0_i32_1 = arith.constant 0 : i32
    %c0_i32_2 = arith.constant 0 : i32
    return %c0_i32, %c0_i32_0, %c0_i32_1 : i32, i32, i32
  }
  func.func @transform_10(%arg0: i32) -> (i32, i32) {
    %c0_i32 = arith.constant 0 : i32
    %c0_i32_0 = arith.constant 0 : i32
    %c0_i32_1 = arith.constant 0 : i32
    return %c0_i32, %c0_i32_0 : i32, i32
  }
  func.func @transform_11(%arg0: i32) -> (i32, i32) {
    %c0_i32 = arith.constant 0 : i32
    %c0_i32_0 = arith.constant 0 : i32
    %c0_i32_1 = arith.constant 0 : i32
    return %c0_i32, %c0_i32_0 : i32, i32
  }
  func.func @transform_12(%arg0: i32) -> (i32, i32) {
    %c0_i32 = arith.constant 0 : i32
    %c0_i32_0 = arith.constant 0 : i32
    %c0_i32_1 = arith.constant 0 : i32
    return %c0_i32, %c0_i32_0 : i32, i32
  }
  func.func @transform_13(%arg0: i32) -> (i32, i32) {
    %c0_i32 = arith.constant 0 : i32
    %c0_i32_0 = arith.constant 0 : i32
    %c0_i32_1 = arith.constant 0 : i32
    return %c0_i32, %c0_i32_0 : i32, i32
  }
  func.func @transform_14(%arg0: i32) -> (i32, i32, i32) {
    %c0_i32 = arith.constant 0 : i32
    %c0_i32_0 = arith.constant 0 : i32
    %c0_i32_1 = arith.constant 0 : i32
    return %arg0, %c0_i32, %c0_i32_0 : i32, i32, i32
  }
}

</mosaic_0001>

<llo_original>
// kernel: uconv_block_forward.1
$region0: #{uconv_block_forward.1}
  #allocation0 [shape = 'u32[]', space=smem, size = 0x4, offset = 0x4, fixed_abs, tag = 'smem constant byte address 0x4 - core index']
  #allocation1 [shape = 'u32[144,128]{1,0:T(1,128)}', space=vmem, size = 0x12000, scoped, tag = 'internal scratch']
  #allocation2 [shape = 'f32[36,32]{1,0:T(8,128)}', space=vmem, size = 0x5000, scoped, tag = 'scratch operand']
  #allocation3 [shape = 'f32[36,32]{1,0:T(8,128)}', space=vmem, size = 0x5000, scoped, tag = 'scratch operand']
  #allocation4 [shape = 'f32[20,32]{1,0:T(8,128)}', space=vmem, size = 0x3000, scoped, tag = 'scratch operand']
  #allocation5 [shape = 'f32[12,32]{1,0:T(8,128)}', space=vmem, size = 0x2000, scoped, tag = 'scratch operand']
  #allocation6 [shape = 'f32[8,32]{1,0:T(8,128)}', space=vmem, size = 0x1000, scoped, tag = 'scratch operand']
  %s0 = inlined_call_operand.vmem [shape: f32[2], index: 0, kind: input, shape index: {}]
  %s1 = inlined_call_operand.vmem [shape: f32[2,32,16], index: 1, kind: input, shape index: {}]
  %s2 = inlined_call_operand.vmem [shape: f32[16,32], index: 2, kind: input, shape index: {}]
  %s3 = inlined_call_operand.vmem [shape: f32[1,32], index: 3, kind: input, shape index: {}]
  %s4 = inlined_call_operand.vmem [shape: f32[1,32], index: 4, kind: input, shape index: {}]
  %s5 = inlined_call_operand.vmem [shape: f32[1,32], index: 5, kind: input, shape index: {}]
  %s6 = inlined_call_operand.vmem [shape: f32[4,5,32], index: 6, kind: input, shape index: {}]
  %s7 = inlined_call_operand.vmem [shape: f32[4,1,32], index: 7, kind: input, shape index: {}]
  %s8 = inlined_call_operand.vmem [shape: f32[4,1,32], index: 8, kind: input, shape index: {}]
  %s9 = inlined_call_operand.vmem [shape: f32[4,1,32], index: 9, kind: input, shape index: {}]
  %s10 = inlined_call_operand.vmem [shape: f32[1,32], index: 10, kind: input, shape index: {}]
  %s11 = inlined_call_operand.vmem [shape: f32[1,32], index: 11, kind: input, shape index: {}]
  %s12 = inlined_call_operand.vmem [shape: f32[32,16], index: 12, kind: input, shape index: {}]
  %s13 = inlined_call_operand.vmem [shape: f32[1,16], index: 13, kind: input, shape index: {}]
  %s14 = inlined_call_operand.vmem [shape: f32[2,32,16], index: 14, kind: output, shape index: {}]
  %s15 = sld [smem:[#allocation0]]
  $region93: #{uconv_block_forward.1} parent=0
    _
  %s17 = ssub.s32 1, %s15
  %s18 = scalar_select 0, %s17, %s15
  $region1: #{uconv_block_forward.1} parent=0
    #allocation7 [shape = 'u8[512]{0}', space=smem, size = 0x200, scoped, tag = 'input window, operand 0, single buffered']
    #allocation8 [shape = 's32[2]{0}', space=sflag, size = 0x8, scoped, tag = 'scoped memory for uconv_block_forward.1']
    %19 = vsyncpa [#allocation8], 0
    loop: start=0, step=1, limit=4
    $region2: #{uconv_block_forward.1} parent=1 // loop_pre_header
      _
    $region3: #{uconv_block_forward.1} parent=1 // loop_header
      %s21 = sphi 0, %s25
      %p22 = scmp.ge.s32.totalorder %s21, 4
      %s29 = sphi 0, %s29
      %s31 = sphi 0, %s29
      %s32 = sphi 0, %s31
      %s46 = sphi 0, %s32
      %s52 = sphi 0, %s54
      %s55 = sphi 0, %s52
      %s56 = sphi 0, %s55
      %s72 = sphi 0, %s56
      %s76 = sphi 0, %s76
      %s78 = sphi 0, %s76
      %s79 = sphi 0, %s78
      %s93 = sphi 0, %s79
      %s97 = sphi 0, %s97
      %s99 = sphi 0, %s97
      %s100 = sphi 0, %s99
      %s114 = sphi 0, %s100
      %s118 = sphi 0, %s118
      %s120 = sphi 0, %s118
      %s121 = sphi 0, %s120
      %s135 = sphi 0, %s121
      %s139 = sphi 0, %s139
      %s141 = sphi 0, %s139
      %s142 = sphi 0, %s141
      %s156 = sphi 0, %s142
      %s160 = sphi 0, %s160
      %s162 = sphi 0, %s160
      %s163 = sphi 0, %s162
      %s177 = sphi 0, %s163
      %s181 = sphi 0, %s181
      %s183 = sphi 0, %s181
      %s184 = sphi 0, %s183
      %s198 = sphi 0, %s184
      %s202 = sphi 0, %s202
      %s204 = sphi 0, %s202
      %s205 = sphi 0, %s204
      %s219 = sphi 0, %s205
      %s223 = sphi 0, %s223
      %s225 = sphi 0, %s223
      %s226 = sphi 0, %s225
      %s240 = sphi 0, %s226
      %s244 = sphi 0, %s244
      %s246 = sphi 0, %s244
      %s247 = sphi 0, %s246
      %s261 = sphi 0, %s247
      %s265 = sphi 0, %s265
      %s267 = sphi 0, %s265
      %s268 = sphi 0, %s267
      %s282 = sphi 0, %s268
      %s286 = sphi 0, %s286
      %s288 = sphi 0, %s286
      %s289 = sphi 0, %s288
      %s303 = sphi 0, %s289
      %s307 = sphi 0, %s307
      %s309 = sphi 0, %s307
      %s310 = sphi 0, %s309
      %s324 = sphi 0, %s310
      %s330 = sphi 0, %s332
      %s333 = sphi 0, %s330
      %s334 = sphi 0, %s333
      %s350 = sphi 0, %s334
    $region4: #{uconv_block_forward.1} parent=1 // loop_header_branch
      %24 = sbr.rel (%p22) target = $region8
    $region5: #{uconv_block_forward.1} parent=1 // loop_body
      %s26 = ssub.s32 %s21, 1
      %s27 = ssub.s32 %s21, 2
      %s28 = sadd.s32 %s21, 1
      %s30 = sadd.s32 %s29, 1
      %p33 = scmp.eq.s32.totalorder %s21, 1
      %p34 = scmp.ne.s32.totalorder %s29, %s31
      %p35 = scmp.eq.s32.totalorder %s21, 0
      %p36 = por %p34, %p35
      %p37 = scmp.ne.s32.totalorder %s29, %s31
      %p38 = scmp.eq.s32.totalorder %s26, 1
      %p39 = por %p37, %p38
      %p40 = scmp.ne.s32.totalorder %s31, %s32
      %p41 = scmp.eq.s32.totalorder %s26, 0
      %p42 = por %p40, %p41
      %p43 = scmp.ne.s32.totalorder %s31, %s32
      %p44 = scmp.eq.s32.totalorder %s27, 1
      %p45 = por %p43, %p44
      %p47 = scmp.ne.s32.totalorder %s32, %s46
      %p48 = scmp.eq.s32.totalorder %s27, 0
      %p49 = por %p47, %p48
      %s50 = ssub.s32 %s21, %s28
      %p51 = scmp.eq.s32.totalorder %s50, 0
      %s53 = sadd.s32 %s52, 1
      %s54 = scalar_select %p51, %s52, %s53
      %p57 = pneg %p51
      %p58 = scmp.eq.s32.totalorder %s21, 1
      %p59 = por %p57, %p58
      %p60 = scmp.ne.s32.totalorder %s52, %s55
      %p61 = scmp.eq.s32.totalorder %s21, 0
      %p62 = por %p60, %p61
      %p63 = scmp.ne.s32.totalorder %s52, %s55
      %p64 = scmp.eq.s32.totalorder %s26, 1
      %p65 = por %p63, %p64
      %p66 = scmp.ne.s32.totalorder %s55, %s56
      %p67 = scmp.eq.s32.totalorder %s26, 0
      %p68 = por %p66, %p67
      %p69 = scmp.ne.s32.totalorder %s55, %s56
      %p70 = scmp.eq.s32.totalorder %s27, 1
      %p71 = por %p69, %p70
      %p73 = scmp.ne.s32.totalorder %s56, %s72
      %p74 = scmp.eq.s32.totalorder %s27, 0
      %p75 = por %p73, %p74
      %s77 = sadd.s32 %s76, 1
      %p80 = scmp.eq.s32.totalorder %s21, 1
      %p81 = scmp.ne.s32.totalorder %s76, %s78
      %p82 = scmp.eq.s32.totalorder %s21, 0
      %p83 = por %p81, %p82
      %p84 = scmp.ne.s32.totalorder %s76, %s78
      %p85 = scmp.eq.s32.totalorder %s26, 1
      %p86 = por %p84, %p85
      %p87 = scmp.ne.s32.totalorder %s78, %s79
      %p88 = scmp.eq.s32.totalorder %s26, 0
      %p89 = por %p87, %p88
      %p90 = scmp.ne.s32.totalorder %s78, %s79
      %p91 = scmp.eq.s32.totalorder %s27, 1
      %p92 = por %p90, %p91
      %p94 = scmp.ne.s32.totalorder %s79, %s93
      %p95 = scmp.eq.s32.totalorder %s27, 0
      %p96 = por %p94, %p95
      %s98 = sadd.s32 %s97, 1
      %p101 = scmp.eq.s32.totalorder %s21, 1
      %p102 = scmp.ne.s32.totalorder %s97, %s99
      %p103 = scmp.eq.s32.totalorder %s21, 0
      %p104 = por %p102, %p103
      %p105 = scmp.ne.s32.totalorder %s97, %s99
      %p106 = scmp.eq.s32.totalorder %s26, 1
      %p107 = por %p105, %p106
      %p108 = scmp.ne.s32.totalorder %s99, %s100
      %p109 = scmp.eq.s32.totalorder %s26, 0
      %p110 = por %p108, %p109
      %p111 = scmp.ne.s32.totalorder %s99, %s100
      %p112 = scmp.eq.s32.totalorder %s27, 1
      %p113 = por %p111, %p112
      %p115 = scmp.ne.s32.totalorder %s100, %s114
      %p116 = scmp.eq.s32.totalorder %s27, 0
      %p117 = por %p115, %p116
      %s119 = sadd.s32 %s118, 1
      %p122 = scmp.eq.s32.totalorder %s21, 1
      %p123 = scmp.ne.s32.totalorder %s118, %s120
      %p124 = scmp.eq.s32.totalorder %s21, 0
      %p125 = por %p123, %p124
      %p126 = scmp.ne.s32.totalorder %s118, %s120
      %p127 = scmp.eq.s32.totalorder %s26, 1
      %p128 = por %p126, %p127
      %p129 = scmp.ne.s32.totalorder %s120, %s121
      %p130 = scmp.eq.s32.totalorder %s26, 0
      %p131 = por %p129, %p130
      %p132 = scmp.ne.s32.totalorder %s120, %s121
      %p133 = scmp.eq.s32.totalorder %s27, 1
      %p134 = por %p132, %p133
      %p136 = scmp.ne.s32.totalorder %s121, %s135
      %p137 = scmp.eq.s32.totalorder %s27, 0
      %p138 = por %p136, %p137
      %s140 = sadd.s32 %s139, 1
      %p143 = scmp.eq.s32.totalorder %s21, 1
      %p144 = scmp.ne.s32.totalorder %s139, %s141
      %p145 = scmp.eq.s32.totalorder %s21, 0
      %p146 = por %p144, %p145
      %p147 = scmp.ne.s32.totalorder %s139, %s141
      %p148 = scmp.eq.s32.totalorder %s26, 1
      %p149 = por %p147, %p148
      %p150 = scmp.ne.s32.totalorder %s141, %s142
      %p151 = scmp.eq.s32.totalorder %s26, 0
      %p152 = por %p150, %p151
      %p153 = scmp.ne.s32.totalorder %s141, %s142
      %p154 = scmp.eq.s32.totalorder %s27, 1
      %p155 = por %p153, %p154
      %p157 = scmp.ne.s32.totalorder %s142, %s156
      %p158 = scmp.eq.s32.totalorder %s27, 0
      %p159 = por %p157, %p158
      %s161 = sadd.s32 %s160, 1
      %p164 = scmp.eq.s32.totalorder %s21, 1
      %p165 = scmp.ne.s32.totalorder %s160, %s162
      %p166 = scmp.eq.s32.totalorder %s21, 0
      %p167 = por %p165, %p166
      %p168 = scmp.ne.s32.totalorder %s160, %s162
      %p169 = scmp.eq.s32.totalorder %s26, 1
      %p170 = por %p168, %p169
      %p171 = scmp.ne.s32.totalorder %s162, %s163
      %p172 = scmp.eq.s32.totalorder %s26, 0
      %p173 = por %p171, %p172
      %p174 = scmp.ne.s32.totalorder %s162, %s163
      %p175 = scmp.eq.s32.totalorder %s27, 1
      %p176 = por %p174, %p175
      %p178 = scmp.ne.s32.totalorder %s163, %s177
      %p179 = scmp.eq.s32.totalorder %s27, 0
      %p180 = por %p178, %p179
      %s182 = sadd.s32 %s181, 1
      %p185 = scmp.eq.s32.totalorder %s21, 1
      %p186 = scmp.ne.s32.totalorder %s181, %s183
      %p187 = scmp.eq.s32.totalorder %s21, 0
      %p188 = por %p186, %p187
      %p189 = scmp.ne.s32.totalorder %s181, %s183
      %p190 = scmp.eq.s32.totalorder %s26, 1
      %p191 = por %p189, %p190
      %p192 = scmp.ne.s32.totalorder %s183, %s184
      %p193 = scmp.eq.s32.totalorder %s26, 0
      %p194 = por %p192, %p193
      %p195 = scmp.ne.s32.totalorder %s183, %s184
      %p196 = scmp.eq.s32.totalorder %s27, 1
      %p197 = por %p195, %p196
      %p199 = scmp.ne.s32.totalorder %s184, %s198
      %p200 = scmp.eq.s32.totalorder %s27, 0
      %p201 = por %p199, %p200
      %s203 = sadd.s32 %s202, 1
      %p206 = scmp.eq.s32.totalorder %s21, 1
      %p207 = scmp.ne.s32.totalorder %s202, %s204
      %p208 = scmp.eq.s32.totalorder %s21, 0
      %p209 = por %p207, %p208
      %p210 = scmp.ne.s32.totalorder %s202, %s204
      %p211 = scmp.eq.s32.totalorder %s26, 1
      %p212 = por %p210, %p211
      %p213 = scmp.ne.s32.totalorder %s204, %s205
      %p214 = scmp.eq.s32.totalorder %s26, 0
      %p215 = por %p213, %p214
      %p216 = scmp.ne.s32.totalorder %s204, %s205
      %p217 = scmp.eq.s32.totalorder %s27, 1
      %p218 = por %p216, %p217
      %p220 = scmp.ne.s32.totalorder %s205, %s219
      %p221 = scmp.eq.s32.totalorder %s27, 0
      %p222 = por %p220, %p221
      %s224 = sadd.s32 %s223, 1
      %p227 = scmp.eq.s32.totalorder %s21, 1
      %p228 = scmp.ne.s32.totalorder %s223, %s225
      %p229 = scmp.eq.s32.totalorder %s21, 0
      %p230 = por %p228, %p229
      %p231 = scmp.ne.s32.totalorder %s223, %s225
      %p232 = scmp.eq.s32.totalorder %s26, 1
      %p233 = por %p231, %p232
      %p234 = scmp.ne.s32.totalorder %s225, %s226
      %p235 = scmp.eq.s32.totalorder %s26, 0
      %p236 = por %p234, %p235
      %p237 = scmp.ne.s32.totalorder %s225, %s226
      %p238 = scmp.eq.s32.totalorder %s27, 1
      %p239 = por %p237, %p238
      %p241 = scmp.ne.s32.totalorder %s226, %s240
      %p242 = scmp.eq.s32.totalorder %s27, 0
      %p243 = por %p241, %p242
      %s245 = sadd.s32 %s244, 1
      %p248 = scmp.eq.s32.totalorder %s21, 1
      %p249 = scmp.ne.s32.totalorder %s244, %s246
      %p250 = scmp.eq.s32.totalorder %s21, 0
      %p251 = por %p249, %p250
      %p252 = scmp.ne.s32.totalorder %s244, %s246
      %p253 = scmp.eq.s32.totalorder %s26, 1
      %p254 = por %p252, %p253
      %p255 = scmp.ne.s32.totalorder %s246, %s247
      %p256 = scmp.eq.s32.totalorder %s26, 0
      %p257 = por %p255, %p256
      %p258 = scmp.ne.s32.totalorder %s246, %s247
      %p259 = scmp.eq.s32.totalorder %s27, 1
      %p260 = por %p258, %p259
      %p262 = scmp.ne.s32.totalorder %s247, %s261
      %p263 = scmp.eq.s32.totalorder %s27, 0
      %p264 = por %p262, %p263
      %s266 = sadd.s32 %s265, 1
      %p269 = scmp.eq.s32.totalorder %s21, 1
      %p270 = scmp.ne.s32.totalorder %s265, %s267
      %p271 = scmp.eq.s32.totalorder %s21, 0
      %p272 = por %p270, %p271
      %p273 = scmp.ne.s32.totalorder %s265, %s267
      %p274 = scmp.eq.s32.totalorder %s26, 1
      %p275 = por %p273, %p274
      %p276 = scmp.ne.s32.totalorder %s267, %s268
      %p277 = scmp.eq.s32.totalorder %s26, 0
      %p278 = por %p276, %p277
      %p279 = scmp.ne.s32.totalorder %s267, %s268
      %p280 = scmp.eq.s32.totalorder %s27, 1
      %p281 = por %p279, %p280
      %p283 = scmp.ne.s32.totalorder %s268, %s282
      %p284 = scmp.eq.s32.totalorder %s27, 0
      %p285 = por %p283, %p284
      %s287 = sadd.s32 %s286, 1
      %p290 = scmp.eq.s32.totalorder %s21, 1
      %p291 = scmp.ne.s32.totalorder %s286, %s288
      %p292 = scmp.eq.s32.totalorder %s21, 0
      %p293 = por %p291, %p292
      %p294 = scmp.ne.s32.totalorder %s286, %s288
      %p295 = scmp.eq.s32.totalorder %s26, 1
      %p296 = por %p294, %p295
      %p297 = scmp.ne.s32.totalorder %s288, %s289
      %p298 = scmp.eq.s32.totalorder %s26, 0
      %p299 = por %p297, %p298
      %p300 = scmp.ne.s32.totalorder %s288, %s289
      %p301 = scmp.eq.s32.totalorder %s27, 1
      %p302 = por %p300, %p301
      %p304 = scmp.ne.s32.totalorder %s289, %s303
      %p305 = scmp.eq.s32.totalorder %s27, 0
      %p306 = por %p304, %p305
      %s308 = sadd.s32 %s307, 1
      %p311 = scmp.eq.s32.totalorder %s21, 1
      %p312 = scmp.ne.s32.totalorder %s307, %s309
      %p313 = scmp.eq.s32.totalorder %s21, 0
      %p314 = por %p312, %p313
      %p315 = scmp.ne.s32.totalorder %s307, %s309
      %p316 = scmp.eq.s32.totalorder %s26, 1
      %p317 = por %p315, %p316
      %p318 = scmp.ne.s32.totalorder %s309, %s310
      %p319 = scmp.eq.s32.totalorder %s26, 0
      %p320 = por %p318, %p319
      %p321 = scmp.ne.s32.totalorder %s309, %s310
      %p322 = scmp.eq.s32.totalorder %s27, 1
      %p323 = por %p321, %p322
      %p325 = scmp.ne.s32.totalorder %s310, %s324
      %p326 = scmp.eq.s32.totalorder %s27, 0
      %p327 = por %p325, %p326
      %s328 = ssub.s32 %s21, %s28
      %p329 = scmp.eq.s32.totalorder %s328, 0
      %s331 = sadd.s32 %s330, 1
      %s332 = scalar_select %p329, %s330, %s331
      %p335 = pneg %p329
      %p336 = scmp.eq.s32.totalorder %s21, 1
      %p337 = por %p335, %p336
      %p338 = scmp.ne.s32.totalorder %s330, %s333
      %p339 = scmp.eq.s32.totalorder %s21, 0
      %p340 = por %p338, %p339
      %p341 = scmp.ne.s32.totalorder %s330, %s333
      %p342 = scmp.eq.s32.totalorder %s26, 1
      %p343 = por %p341, %p342
      %p344 = scmp.ne.s32.totalorder %s333, %s334
      %p345 = scmp.eq.s32.totalorder %s26, 0
      %p346 = por %p344, %p345
      %p347 = scmp.ne.s32.totalorder %s333, %s334
      %p348 = scmp.eq.s32.totalorder %s27, 1
      %p349 = por %p347, %p348
      %p351 = scmp.ne.s32.totalorder %s334, %s350
      %p352 = scmp.eq.s32.totalorder %s27, 0
      %p353 = por %p351, %p352
      %p354 = scmp.le.s32.totalorder 1, %s21
      %p355 = scmp.lt.s32.totalorder %s21, 3
      %p356 = pnand %p354, %p355
      %p357 = pneg %p356
      // Predicated region
      $region9: #{uconv_block_forward.1} parent=5 // pred_check
        _
      $region10: #{uconv_block_forward.1} parent=5 // pred_check_branch
        %359 = sbr.rel (%p356) target = $region12
      $region11: #{uconv_block_forward.1} parent=5 // pred_region
        %s360 = ssub.s32 %s21, 1
        // Predicated region
        $region13: #{uconv_block_forward.1} parent=11 // pred_check
          %p361 = pneg %p42
        $region14: #{uconv_block_forward.1} parent=11 // pred_check_branch
          %363 = sbr.rel (%p361) target = $region16
        $region15: #{uconv_block_forward.1} parent=11 // pred_region
          %s365 = ssub.s32 16, 16
          %366 = vsyncadd [#allocation8], %s365
          %s368 = sshll.u32 %s0, 4
          %s369 = int_to_ptr.vmem [resolvable:$true] %s368
          %371 = dma.vmem_to_smem %s369, 16, [#allocation7], [#allocation8]
        $region16: #{uconv_block_forward.1} parent=11 // pred_fallthru
          _
        // Predicated region
        $region17: #{uconv_block_forward.1} parent=11 // pred_check
          %p372 = pneg %p89
        $region18: #{uconv_block_forward.1} parent=11 // pred_check_branch
          %374 = sbr.rel (%p372) target = $region20
        $region19: #{uconv_block_forward.1} parent=11 // pred_region
          _
        $region20: #{uconv_block_forward.1} parent=11 // pred_fallthru
          _
        // Predicated region
        $region21: #{uconv_block_forward.1} parent=11 // pred_check
          %p375 = pneg %p110
        $region22: #{uconv_block_forward.1} parent=11 // pred_check_branch
          %377 = sbr.rel (%p375) target = $region24
        $region23: #{uconv_block_forward.1} parent=11 // pred_region
          _
        $region24: #{uconv_block_forward.1} parent=11 // pred_fallthru
          _
        // Predicated region
        $region25: #{uconv_block_forward.1} parent=11 // pred_check
          %p378 = pneg %p131
        $region26: #{uconv_block_forward.1} parent=11 // pred_check_branch
          %380 = sbr.rel (%p378) target = $region28
        $region27: #{uconv_block_forward.1} parent=11 // pred_region
          _
        $region28: #{uconv_block_forward.1} parent=11 // pred_fallthru
          _
        // Predicated region
        $region29: #{uconv_block_forward.1} parent=11 // pred_check
          %p381 = pneg %p152
        $region30: #{uconv_block_forward.1} parent=11 // pred_check_branch
          %383 = sbr.rel (%p381) target = $region32
        $region31: #{uconv_block_forward.1} parent=11 // pred_region
          _
        $region32: #{uconv_block_forward.1} parent=11 // pred_fallthru
          _
        // Predicated region
        $region33: #{uconv_block_forward.1} parent=11 // pred_check
          %p384 = pneg %p173
        $region34: #{uconv_block_forward.1} parent=11 // pred_check_branch
          %386 = sbr.rel (%p384) target = $region36
        $region35: #{uconv_block_forward.1} parent=11 // pred_region
          _
        $region36: #{uconv_block_forward.1} parent=11 // pred_fallthru
          _
        // Predicated region
        $region37: #{uconv_block_forward.1} parent=11 // pred_check
          %p387 = pneg %p194
        $region38: #{uconv_block_forward.1} parent=11 // pred_check_branch
          %389 = sbr.rel (%p387) target = $region40
        $region39: #{uconv_block_forward.1} parent=11 // pred_region
          _
        $region40: #{uconv_block_forward.1} parent=11 // pred_fallthru
          _
        // Predicated region
        $region41: #{uconv_block_forward.1} parent=11 // pred_check
          %p390 = pneg %p215
        $region42: #{uconv_block_forward.1} parent=11 // pred_check_branch
          %392 = sbr.rel (%p390) target = $region44
        $region43: #{uconv_block_forward.1} parent=11 // pred_region
          _
        $region44: #{uconv_block_forward.1} parent=11 // pred_fallthru
          _
        // Predicated region
        $region45: #{uconv_block_forward.1} parent=11 // pred_check
          %p393 = pneg %p236
        $region46: #{uconv_block_forward.1} parent=11 // pred_check_branch
          %395 = sbr.rel (%p393) target = $region48
        $region47: #{uconv_block_forward.1} parent=11 // pred_region
          _
        $region48: #{uconv_block_forward.1} parent=11 // pred_fallthru
          _
        // Predicated region
        $region49: #{uconv_block_forward.1} parent=11 // pred_check
          %p396 = pneg %p257
        $region50: #{uconv_block_forward.1} parent=11 // pred_check_branch
          %398 = sbr.rel (%p396) target = $region52
        $region51: #{uconv_block_forward.1} parent=11 // pred_region
          _
        $region52: #{uconv_block_forward.1} parent=11 // pred_fallthru
          _
        // Predicated region
        $region53: #{uconv_block_forward.1} parent=11 // pred_check
          %p399 = pneg %p278
        $region54: #{uconv_block_forward.1} parent=11 // pred_check_branch
          %401 = sbr.rel (%p399) target = $region56
        $region55: #{uconv_block_forward.1} parent=11 // pred_region
          _
        $region56: #{uconv_block_forward.1} parent=11 // pred_fallthru
          _
        // Predicated region
        $region57: #{uconv_block_forward.1} parent=11 // pred_check
          %p402 = pneg %p299
        $region58: #{uconv_block_forward.1} parent=11 // pred_check_branch
          %404 = sbr.rel (%p402) target = $region60
        $region59: #{uconv_block_forward.1} parent=11 // pred_region
          _
        $region60: #{uconv_block_forward.1} parent=11 // pred_fallthru
          _
        // Predicated region
        $region61: #{uconv_block_forward.1} parent=11 // pred_check
          %p405 = pneg %p320
        $region62: #{uconv_block_forward.1} parent=11 // pred_check_branch
          %407 = sbr.rel (%p405) target = $region64
        $region63: #{uconv_block_forward.1} parent=11 // pred_region
          _
        $region64: #{uconv_block_forward.1} parent=11 // pred_fallthru
          _
      $region12: #{uconv_block_forward.1} parent=5 // pred_fallthru
        _
      %p408 = scmp.lt.s32.totalorder %s21, 2
      // Predicated region
      $region65: #{uconv_block_forward.1} parent=5 // pred_check
        %p409 = pneg %p408
      $region66: #{uconv_block_forward.1} parent=5 // pred_check_branch
        %411 = sbr.rel (%p409) target = $region68
      $region67: #{uconv_block_forward.1} parent=5 // pred_region
        // Predicated region
        $region69: #{uconv_block_forward.1} parent=67 // pred_check
          %p412 = pneg %p62
        $region70: #{uconv_block_forward.1} parent=67 // pred_check_branch
          %414 = sbr.rel (%p412) target = $region72
        $region71: #{uconv_block_forward.1} parent=67 // pred_region
          %p415 = scmp.lt.s32.totalorder %s21, 1
          %s416 = scalar_select %p415, %s21, 1
          %s417 = smul.addr %s416, 4
          %s418 = smul.addr %s417, 8
          %s419 = scalar_lea.vmem %s1, %s418
        $region72: #{uconv_block_forward.1} parent=67 // pred_fallthru
          _
      $region68: #{uconv_block_forward.1} parent=5 // pred_fallthru
        _
      %p420 = scmp.le.s32.totalorder 1, %s21
      %p421 = scmp.lt.s32.totalorder %s21, 3
      %p422 = pnand %p420, %p421
      %p423 = pneg %p422
      // Predicated region
      $region73: #{uconv_block_forward.1} parent=5 // pred_check
        _
      $region74: #{uconv_block_forward.1} parent=5 // pred_check_branch
        %425 = sbr.rel (%p422) target = $region76
      $region75: #{uconv_block_forward.1} parent=5 // pred_region
        %s426 = ssub.s32 %s21, 1
        // Predicated region
        $region77: #{uconv_block_forward.1} parent=75 // pred_check
          %p427 = pneg %p42
        $region78: #{uconv_block_forward.1} parent=75 // pred_check_branch
          %429 = sbr.rel (%p427) target = $region80
        $region79: #{uconv_block_forward.1} parent=75 // pred_region
          %430 = dma.done [#allocation8], 16
        $region80: #{uconv_block_forward.1} parent=75 // pred_fallthru
          _
        %431 = sfence
        %p432 = pneg %p42
        %p433 = pneg %p39
        %p434 = scmp.lt.s32.totalorder %s26, 1
        %s435 = scalar_select %p434, %s26, 1
        %s436 = smul.addr %s435, 4
        %s437 = smul.addr %s436, 8
        %s438 = scalar_lea.vmem %s1, %s437
        %p439 = pneg %p68
        %p440 = pneg %p65
        %p441 = pneg %p89
        %p442 = pneg %p86
        %p443 = pneg %p110
        %p444 = pneg %p107
        %p445 = pneg %p131
        %p446 = pneg %p128
        %p447 = pneg %p152
        %p448 = pneg %p149
        %p449 = pneg %p173
        %p450 = pneg %p170
        %p451 = pneg %p194
        %p452 = pneg %p191
        %p453 = pneg %p215
        %p454 = pneg %p212
        %p455 = pneg %p236
        %p456 = pneg %p233
        %p457 = pneg %p257
        %p458 = pneg %p254
        %p459 = pneg %p278
        %p460 = pneg %p275
        %p461 = pneg %p299
        %p462 = pneg %p296
        %p463 = pneg %p320
        %p464 = pneg %p317
        %p465 = pneg %p346
        %p466 = pneg %p343
        %p467 = scmp.lt.s32.totalorder %s26, 1
        %s468 = scalar_select %p467, %s26, 1
        %s469 = smul.addr %s468, 4
        %s470 = smul.addr %s469, 8
        %s471 = scalar_lea.vmem %s14, %s470
        %p472 = scmp.lt.s32.totalorder %s26, 1
        %s473 = scalar_select %p472, %s26, 1
        %s474 = smul.addr %s473, 4
        %s475 = smul.addr %s474, 8
        %s476 = scalar_lea.vmem %s1, %s475
        %p477 = scmp.lt.s32.totalorder %s26, 1
        %s478 = scalar_select %p477, %s26, 1
        %s479 = smul.addr %s478, 4
        %s480 = smul.addr %s479, 8
        %s481 = scalar_lea.vmem %s14, %s480
        %v483 = vld [vmem:[%s476] sm:$0xff]
        %v484 = vld [vmem:[%s476 + $0x8] sm:$0xff]
        %v485 = vld [vmem:[%s476 + $0x10] sm:$0xff]
        %v486 = vld [vmem:[%s476 + $0x18] sm:$0xff]
        %v487 = vpack.c.bf16 %v484, %v483
        %v488 = vpack.c.bf16 %v486, %v485
        %v489 = vld [vmem:[%s2] sm:$0xff]
        %v490 = vld [vmem:[%s2 + $0x8] sm:$0xff]
        %v491 = vpack.c.bf16 %v490, %v489
        %v492 = vld [vmem:[%s3] sm:$0x1]
        %v494 = vlaneseq
        %v495 = vshrl.u32 %v494, 7
        %v496 = vsub.s32 0, %v495
        %v497 = vrot.slane %v492, %v496
        %vm499 = vcmask 130048
        %v501 = vsel %vm499, %v487, 0
        %v504 = vsel %vm499, %v488, 0
        %506 = vmatprep.subr.bf16.mxu0 0
        %507 = vmatpush1.bf16.msra.mxu0 0
        %508 = vmatprep.subr.bf16.mxu0 0
        %509 = vmatpush1.bf16.msra.mxu0 0
        %510 = vmatprep.subr.bf16.mxu0 0
        %511 = vmatpush1.bf16.msra.mxu0 0
        %512 = vmatprep.subr.bf16.mxu0 0
        %513 = vmatpush1.bf16.msra.mxu0 0
        %514 = vmatprep.subr.bf16.mxu0 0
        %515 = vmatpush1.bf16.msra.mxu0 0
        %516 = vmatprep.subr.bf16.mxu0 0
        %517 = vmatpush1.bf16.msra.mxu0 0
        %518 = vmatprep.subr.bf16.mxu0 0
        %519 = vmatpush1.bf16.msra.mxu0 0
        %520 = vmatprep.subr.bf16.mxu0 0
        %521 = vmatpush1.bf16.msra.mxu0 %v491
        %522 = vmatprep.subr.bf16.mxu0 0
        %523 = vmatpush2.bf16.msra.mxu0 0
        %524 = vmatprep.subr.bf16.mxu0 0
        %525 = vmatpush2.bf16.msra.mxu0 0
        %526 = vmatprep.subr.bf16.mxu0 0
        %527 = vmatpush2.bf16.msra.mxu0 0
        %528 = vmatprep.subr.bf16.mxu0 0
        %529 = vmatpush2.bf16.msra.mxu0 0
        %530 = vmatprep.subr.bf16.mxu0 0
        %531 = vmatpush2.bf16.msra.mxu0 0
        %532 = vmatprep.subr.bf16.mxu0 0
        %533 = vmatpush2.bf16.msra.mxu0 0
        %534 = vmatprep.subr.bf16.mxu0 0
        %535 = vmatpush2.bf16.msra.mxu0 0
        %536 = vmatprep.subr.bf16.mxu0 0
        %537 = vmatpush2.bf16.msra.mxu0 0
        %538 = vmatprep.mubr.bf16.mxu0 0
        %539 = vmatmul.mubr.bf16.gmra.mxu0 %v501
        %v540 = vpop.f32.mrf.mxu0
        %v541 = vadd.f32 %v497, %v540
        %v542 = vpop.f32.mrf.mxu0
        %v543 = vpop.f32.mrf.mxu0
        %v544 = vadd.f32 %v497, %v543
        %v545 = vpop.f32.mrf.mxu0
        %546 = vmatprep.mubr.bf16.mxu0 0
        %547 = vmatmul.mubr.bf16.gmra.mxu0 %v504
        %v548 = vpop.f32.mrf.mxu0
        %v549 = vadd.f32 %v497, %v548
        %v550 = vpop.f32.mrf.mxu0
        %v551 = vpop.f32.mrf.mxu0
        %v552 = vadd.f32 %v497, %v551
        %v553 = vpop.f32.mrf.mxu0
        %554 = vdwg.mxu0
        %v555 = vld [vmem:[%s4] sm:$0x1]
        %v556 = vld [vmem:[%s5] sm:$0x1]
        %vm557 = vcmask 261120
        %v558 = vsel %vm557, %v541, 0.0
        %v559 = vsel %vm557, %v544, 0.0
        %v560 = vadd.f32 %v558, %v559
        %v561 = vsel %vm557, %v549, 0.0
        %v562 = vadd.f32 %v560, %v561
        %v563 = vsel %vm557, %v552, 0.0
        %v564 = vadd.f32 %v562, %v563
        %565 = vadd.xlane.f32.xlu0 %v564
        %v566 = vpop.xlane.xlu0 %565
        %v567 = vrot.slane %v566, 4
        %v568 = vadd.f32 %v566, %v567
        %v569 = vrot.slane %v568, 2
        %v570 = vadd.f32 %v568, %v569
        %v571 = vrot.slane %v570, 1
        %v572 = vadd.f32 %v570, %v571
        %s573 = vtos %v572
        %v574 = vmul.f32 %v541, %v541
        %v575 = vmul.f32 %v544, %v544
        %v576 = vmul.f32 %v549, %v549
        %v577 = vmul.f32 %v552, %v552
        %v578 = vsel %vm557, %v574, 0.0
        %v579 = vsel %vm557, %v575, 0.0
        %v580 = vadd.f32 %v578, %v579
        %v581 = vsel %vm557, %v576, 0.0
        %v582 = vadd.f32 %v580, %v581
        %v583 = vsel %vm557, %v577, 0.0
        %v584 = vadd.f32 %v582, %v583
        %585 = vadd.xlane.f32.xlu0 %v584
        %v586 = vpop.xlane.xlu0 %585
        %v587 = vrot.slane %v586, 4
        %v588 = vadd.f32 %v586, %v587
        %v589 = vrot.slane %v588, 2
        %v590 = vadd.f32 %v588, %v589
        %v591 = vrot.slane %v590, 1
        %v592 = vadd.f32 %v590, %v591
        %s593 = vtos %v592
        %v594 = vrcp.pop 1024.0
        %s595 = vtos %v594
        %s596 = smul.f32 %s573, %s595
        %v597 = vrcp.pop 1024.0
        %s598 = vtos %v597
        %s599 = smul.f32 %s593, %s598
        %s600 = smul.f32 %s596, %s596
        %s601 = ssub.f32 %s599, %s600
        %s602 = smax.f32 %s601, 0.0
        %v603 = vstv %s596
        %v604 = vsub.f32 %v541, %v603
        %v605 = vsub.f32 %v544, %v603
        %v606 = vsub.f32 %v549, %v603
        %v607 = vsub.f32 %v552, %v603
        %s608 = sadd.f32 %s602, 1e-08
        %v609 = vstv %s608
        %v610 = vrsqrt.pop %v609
        %s611 = vtos %v610
        %v612 = vstv %s611
        %v613 = vmul.f32 %v604, %v612
        %v614 = vmul.f32 %v605, %v612
        %v615 = vmul.f32 %v606, %v612
        %v616 = vmul.f32 %v607, %v612
        %v618 = vlaneseq
        %v619 = vshrl.u32 %v618, 7
        %v620 = vsub.s32 0, %v619
        %v621 = vrot.slane %v555, %v620
        %v623 = vmul.f32 %v613, %v621
        %v624 = vmul.f32 %v614, %v621
        %v625 = vmul.f32 %v615, %v621
        %v626 = vmul.f32 %v616, %v621
        %v628 = vlaneseq
        %v629 = vshrl.u32 %v628, 7
        %v630 = vsub.s32 0, %v629
        %v631 = vrot.slane %v556, %v630
        %v633 = vadd.f32 %v623, %v631
        %v634 = vadd.f32 %v624, %v631
        %v635 = vadd.f32 %v625, %v631
        %v636 = vadd.f32 %v626, %v631
        %vm637 = vcmp.gt.f32.partialorder %v633, 0.0
        %vm638 = vcmp.gt.f32.partialorder %v634, 0.0
        %vm639 = vcmp.gt.f32.partialorder %v635, 0.0
        %vm640 = vcmp.gt.f32.partialorder %v636, 0.0
        %s641 = sld [smem:[#allocation7]]
        %v642 = vstv %s641
        %v643 = vmul.f32 %v642, %v633
        %v644 = vmul.f32 %v642, %v634
        %v645 = vmul.f32 %v642, %v635
        %v646 = vmul.f32 %v642, %v636
        %v647 = vsel %vm637, %v633, %v643
        %v648 = vsel %vm638, %v634, %v644
        %v649 = vsel %vm639, %v635, %v645
        %v650 = vsel %vm640, %v636, %v646
        %vm651 = vcmask 254976
        %652 = vst.msk [vmem:[#allocation2] sm:$0x3] %vm651, 0.0
        %653 = vst.msk [vmem:[#allocation2 + $0x22] sm:$0x3] %vm651, 0.0
        %654 = vst.msk [vmem:[#allocation2 + $0x2] sm:$0xff] %vm557, %v647
        %655 = vst.msk [vmem:[#allocation2 + $0xa] sm:$0xff] %vm557, %v648
        %656 = vst.msk [vmem:[#allocation2 + $0x12] sm:$0xff] %vm557, %v649
        %657 = vst.msk [vmem:[#allocation2 + $0x1a] sm:$0xff] %vm557, %v650
        %v658 = vld [vmem:[%s6] sm:$0x1f]
        %v659 = vld [vmem:[#allocation2] sm:$0xff]
        %v660 = vld [vmem:[#allocation2 + $0x8] sm:$0xff]
        %v661 = vld [vmem:[#allocation2 + $0x10] sm:$0xff]
        %v662 = vld [vmem:[#allocation2 + $0x18] sm:$0xff]
        %v663 = vlaneseq
        %v664 = vshrl.u32 %v663, 7
        %v665 = vsub.s32 0, %v664
        %v666 = vrot.slane %v658, %v665
        %v667 = vmul.f32 %v666, %v659
        %v668 = vmul.f32 %v666, %v660
        %v669 = vmul.f32 %v666, %v661
        %v670 = vmul.f32 %v666, %v662
        %v671 = vld [vmem:[#allocation2 + $0x1] sm:$0xff]
        %v672 = vld [vmem:[#allocation2 + $0x9] sm:$0xff]
        %v673 = vld [vmem:[#allocation2 + $0x11] sm:$0xff]
        %v674 = vld [vmem:[#allocation2 + $0x19] sm:$0xff]
        %v675 = vlaneseq
        %v676 = vshrl.u32 %v675, 7
        %v677 = vsub.s32 1, %v676
        %v678 = vrot.slane %v658, %v677
        %v679 = vmul.f32 %v678, %v671
        %v680 = vmul.f32 %v678, %v672
        %v681 = vmul.f32 %v678, %v673
        %v682 = vmul.f32 %v678, %v674
        %v683 = vadd.f32 %v667, %v679
        %v684 = vadd.f32 %v668, %v680
        %v685 = vadd.f32 %v669, %v681
        %v686 = vadd.f32 %v670, %v682
        %v687 = vld [vmem:[#allocation2 + $0x2] sm:$0xff]
        %v688 = vld [vmem:[#allocation2 + $0xa] sm:$0xff]
        %v689 = vld [vmem:[#allocation2 + $0x12] sm:$0xff]
        %v690 = vld [vmem:[#allocation2 + $0x1a] sm:$0xff]
        %v691 = vlaneseq
        %v692 = vshrl.u32 %v691, 7
        %v693 = vsub.s32 2, %v692
        %v694 = vrot.slane %v658, %v693
        %v695 = vmul.f32 %v694, %v687
        %v696 = vmul.f32 %v694, %v688
        %v697 = vmul.f32 %v694, %v689
        %v698 = vmul.f32 %v694, %v690
        %v699 = vadd.f32 %v683, %v695
        %v700 = vadd.f32 %v684, %v696
        %v701 = vadd.f32 %v685, %v697
        %v702 = vadd.f32 %v686, %v698
        %v703 = vld [vmem:[#allocation2 + $0x3] sm:$0xff]
        %v704 = vld [vmem:[#allocation2 + $0xb] sm:$0xff]
        %v705 = vld [vmem:[#allocation2 + $0x13] sm:$0xff]
        %v706 = vld [vmem:[#allocation2 + $0x1b] sm:$0xff]
        %v707 = vlaneseq
        %v708 = vshrl.u32 %v707, 7
        %v709 = vsub.s32 3, %v708
        %v710 = vrot.slane %v658, %v709
        %v711 = vmul.f32 %v710, %v703
        %v712 = vmul.f32 %v710, %v704
        %v713 = vmul.f32 %v710, %v705
        %v714 = vmul.f32 %v710, %v706
        %v715 = vadd.f32 %v699, %v711
        %v716 = vadd.f32 %v700, %v712
        %v717 = vadd.f32 %v701, %v713
        %v718 = vadd.f32 %v702, %v714
        %v719 = vld [vmem:[#allocation2 + $0x4] sm:$0xff]
        %v720 = vld [vmem:[#allocation2 + $0xc] sm:$0xff]
        %v721 = vld [vmem:[#allocation2 + $0x14] sm:$0xff]
        %v722 = vld [vmem:[#allocation2 + $0x1c] sm:$0xff]
        %v723 = vlaneseq
        %v724 = vshrl.u32 %v723, 7
        %v725 = vsub.s32 4, %v724
        %v726 = vrot.slane %v658, %v725
        %v727 = vmul.f32 %v726, %v719
        %v728 = vmul.f32 %v726, %v720
        %v729 = vmul.f32 %v726, %v721
        %v730 = vmul.f32 %v726, %v722
        %v731 = vadd.f32 %v715, %v727
        %v732 = vadd.f32 %v716, %v728
        %v733 = vadd.f32 %v717, %v729
        %v734 = vadd.f32 %v718, %v730
        %v735 = vld [vmem:[%s7] sm:$0x1]
        %v737 = vlaneseq
        %v738 = vshrl.u32 %v737, 7
        %v739 = vsub.s32 0, %v738
        %v740 = vrot.slane %v735, %v739
        %v742 = vadd.f32 %v731, %v740
        %v743 = vadd.f32 %v732, %v740
        %v744 = vadd.f32 %v733, %v740
        %v745 = vadd.f32 %v734, %v740
        %v746 = vld [vmem:[%s8] sm:$0x1]
        %v747 = vld [vmem:[%s9] sm:$0x1]
        %v748 = vsel %vm557, %v742, 0.0
        %v749 = vsel %vm557, %v743, 0.0
        %v750 = vadd.f32 %v748, %v749
        %v751 = vsel %vm557, %v744, 0.0
        %v752 = vadd.f32 %v750, %v751
        %v753 = vsel %vm557, %v745, 0.0
        %v754 = vadd.f32 %v752, %v753
        %755 = vadd.xlane.f32.xlu0 %v754
        %v756 = vpop.xlane.xlu0 %755
        %v757 = vrot.slane %v756, 4
        %v758 = vadd.f32 %v756, %v757
        %v759 = vrot.slane %v758, 2
        %v760 = vadd.f32 %v758, %v759
        %v761 = vrot.slane %v760, 1
        %v762 = vadd.f32 %v760, %v761
        %s763 = vtos %v762
        %v764 = vmul.f32 %v742, %v742
        %v765 = vmul.f32 %v743, %v743
        %v766 = vmul.f32 %v744, %v744
        %v767 = vmul.f32 %v745, %v745
        %v768 = vsel %vm557, %v764, 0.0
        %v769 = vsel %vm557, %v765, 0.0
        %v770 = vadd.f32 %v768, %v769
        %v771 = vsel %vm557, %v766, 0.0
        %v772 = vadd.f32 %v770, %v771
        %v773 = vsel %vm557, %v767, 0.0
        %v774 = vadd.f32 %v772, %v773
        %775 = vadd.xlane.f32.xlu0 %v774
        %v776 = vpop.xlane.xlu0 %775
        %v777 = vrot.slane %v776, 4
        %v778 = vadd.f32 %v776, %v777
        %v779 = vrot.slane %v778, 2
        %v780 = vadd.f32 %v778, %v779
        %v781 = vrot.slane %v780, 1
        %v782 = vadd.f32 %v780, %v781
        %s783 = vtos %v782
        %v784 = vrcp.pop 1024.0
        %s785 = vtos %v784
        %s786 = smul.f32 %s763, %s785
        %v787 = vrcp.pop 1024.0
        %s788 = vtos %v787
        %s789 = smul.f32 %s783, %s788
        %s790 = smul.f32 %s786, %s786
        %s791 = ssub.f32 %s789, %s790
        %s792 = smax.f32 %s791, 0.0
        %v793 = vstv %s786
        %v794 = vsub.f32 %v742, %v793
        %v795 = vsub.f32 %v743, %v793
        %v796 = vsub.f32 %v744, %v793
        %v797 = vsub.f32 %v745, %v793
        %s798 = sadd.f32 %s792, 1e-08
        %v799 = vstv %s798
        %v800 = vrsqrt.pop %v799
        %s801 = vtos %v800
        %v802 = vstv %s801
        %v803 = vmul.f32 %v794, %v802
        %v804 = vmul.f32 %v795, %v802
        %v805 = vmul.f32 %v796, %v802
        %v806 = vmul.f32 %v797, %v802
        %v808 = vlaneseq
        %v809 = vshrl.u32 %v808, 7
        %v810 = vsub.s32 0, %v809
        %v811 = vrot.slane %v746, %v810
        %v813 = vmul.f32 %v803, %v811
        %v814 = vmul.f32 %v804, %v811
        %v815 = vmul.f32 %v805, %v811
        %v816 = vmul.f32 %v806, %v811
        %v818 = vlaneseq
        %v819 = vshrl.u32 %v818, 7
        %v820 = vsub.s32 0, %v819
        %v821 = vrot.slane %v747, %v820
        %v823 = vadd.f32 %v813, %v821
        %v824 = vadd.f32 %v814, %v821
        %v825 = vadd.f32 %v815, %v821
        %v826 = vadd.f32 %v816, %v821
        %827 = vst.msk [vmem:[#allocation3] sm:$0x3] %vm651, 0.0
        %828 = vst.msk [vmem:[#allocation3 + $0x22] sm:$0x3] %vm651, 0.0
        %829 = vst.msk [vmem:[#allocation3 + $0x2] sm:$0xff] %vm557, %v823
        %830 = vst.msk [vmem:[#allocation3 + $0xa] sm:$0xff] %vm557, %v824
        %831 = vst.msk [vmem:[#allocation3 + $0x12] sm:$0xff] %vm557, %v825
        %832 = vst.msk [vmem:[#allocation3 + $0x1a] sm:$0xff] %vm557, %v826
        %s833 = scalar_lea.vmem %s6, 8
        %v834 = vld [vmem:[%s833] sm:$0x1f]
        %v835 = vld [vmem:[#allocation3] ss:$2 sm:$0xff]
        %s836 = scalar_lea.vmem [#allocation3], 16
        %v837 = vld [vmem:[%s836] ss:$2 sm:$0xff]
        %v838 = vlaneseq
        %v839 = vshrl.u32 %v838, 7
        %v840 = vsub.s32 0, %v839
        %v841 = vrot.slane %v834, %v840
        %v842 = vmul.f32 %v841, %v835
        %v843 = vmul.f32 %v841, %v837
        %s844 = scalar_lea.vmem [#allocation3], 1
        %v845 = vld [vmem:[%s844] ss:$2 sm:$0xff]
        %s846 = scalar_lea.vmem [#allocation3], 17
        %v847 = vld [vmem:[%s846] ss:$2 sm:$0xff]
        %v848 = vlaneseq
        %v849 = vshrl.u32 %v848, 7
        %v850 = vsub.s32 1, %v849
        %v851 = vrot.slane %v834, %v850
        %v852 = vmul.f32 %v851, %v845
        %v853 = vmul.f32 %v851, %v847
        %v854 = vadd.f32 %v842, %v852
        %v855 = vadd.f32 %v843, %v853
        %s856 = scalar_lea.vmem [#allocation3], 2
        %v857 = vld [vmem:[%s856] ss:$2 sm:$0xff]
        %s858 = scalar_lea.vmem [#allocation3], 18
        %v859 = vld [vmem:[%s858] ss:$2 sm:$0xff]
        %v860 = vlaneseq
        %v861 = vshrl.u32 %v860, 7
        %v862 = vsub.s32 2, %v861
        %v863 = vrot.slane %v834, %v862
        %v864 = vmul.f32 %v863, %v857
        %v865 = vmul.f32 %v863, %v859
        %v866 = vadd.f32 %v854, %v864
        %v867 = vadd.f32 %v855, %v865
        %s868 = scalar_lea.vmem [#allocation3], 3
        %v869 = vld [vmem:[%s868] ss:$2 sm:$0xff]
        %s870 = scalar_lea.vmem [#allocation3], 19
        %v871 = vld [vmem:[%s870] ss:$2 sm:$0xff]
        %v872 = vlaneseq
        %v873 = vshrl.u32 %v872, 7
        %v874 = vsub.s32 3, %v873
        %v875 = vrot.slane %v834, %v874
        %v876 = vmul.f32 %v875, %v869
        %v877 = vmul.f32 %v875, %v871
        %v878 = vadd.f32 %v866, %v876
        %v879 = vadd.f32 %v867, %v877
        %s880 = scalar_lea.vmem [#allocation3], 4
        %v881 = vld [vmem:[%s880] ss:$2 sm:$0xff]
        %s882 = scalar_lea.vmem [#allocation3], 20
        %v883 = vld [vmem:[%s882] ss:$2 sm:$0xff]
        %v884 = vlaneseq
        %v885 = vshrl.u32 %v884, 7
        %v886 = vsub.s32 4, %v885
        %v887 = vrot.slane %v834, %v886
        %v888 = vmul.f32 %v887, %v881
        %v889 = vmul.f32 %v887, %v883
        %v890 = vadd.f32 %v878, %v888
        %v891 = vadd.f32 %v879, %v889
        %s892 = scalar_lea.vmem %s7, 1
        %v893 = vld [vmem:[%s892] sm:$0x1]
        %v895 = vlaneseq
        %v896 = vshrl.u32 %v895, 7
        %v897 = vsub.s32 0, %v896
        %v898 = vrot.slane %v893, %v897
        %v900 = vadd.f32 %v890, %v898
        %v901 = vadd.f32 %v891, %v898
        %s902 = scalar_lea.vmem %s8, 1
        %v903 = vld [vmem:[%s902] sm:$0x1]
        %s904 = scalar_lea.vmem %s9, 1
        %v905 = vld [vmem:[%s904] sm:$0x1]
        %v906 = vsel %vm557, %v900, 0.0
        %v907 = vsel %vm557, %v901, 0.0
        %v908 = vadd.f32 %v906, %v907
        %909 = vadd.xlane.f32.xlu0 %v908
        %v910 = vpop.xlane.xlu0 %909
        %v911 = vrot.slane %v910, 4
        %v912 = vadd.f32 %v910, %v911
        %v913 = vrot.slane %v912, 2
        %v914 = vadd.f32 %v912, %v913
        %v915 = vrot.slane %v914, 1
        %v916 = vadd.f32 %v914, %v915
        %s917 = vtos %v916
        %v918 = vmul.f32 %v900, %v900
        %v919 = vmul.f32 %v901, %v901
        %v920 = vsel %vm557, %v918, 0.0
        %v921 = vsel %vm557, %v919, 0.0
        %v922 = vadd.f32 %v920, %v921
        %923 = vadd.xlane.f32.xlu0 %v922
        %v924 = vpop.xlane.xlu0 %923
        %v925 = vrot.slane %v924, 4
        %v926 = vadd.f32 %v924, %v925
        %v927 = vrot.slane %v926, 2
        %v928 = vadd.f32 %v926, %v927
        %v929 = vrot.slane %v928, 1
        %v930 = vadd.f32 %v928, %v929
        %s931 = vtos %v930
        %v932 = vrcp.pop 512.0
        %s933 = vtos %v932
        %s934 = smul.f32 %s917, %s933
        %v935 = vrcp.pop 512.0
        %s936 = vtos %v935
        %s937 = smul.f32 %s931, %s936
        %s938 = smul.f32 %s934, %s934
        %s939 = ssub.f32 %s937, %s938
        %s940 = smax.f32 %s939, 0.0
        %v941 = vstv %s934
        %v942 = vsub.f32 %v900, %v941
        %v943 = vsub.f32 %v901, %v941
        %s944 = sadd.f32 %s940, 1e-08
        %v945 = vstv %s944
        %v946 = vrsqrt.pop %v945
        %s947 = vtos %v946
        %v948 = vstv %s947
        %v949 = vmul.f32 %v942, %v948
        %v950 = vmul.f32 %v943, %v948
        %v952 = vlaneseq
        %v953 = vshrl.u32 %v952, 7
        %v954 = vsub.s32 0, %v953
        %v955 = vrot.slane %v903, %v954
        %v957 = vmul.f32 %v949, %v955
        %v958 = vmul.f32 %v950, %v955
        %v960 = vlaneseq
        %v961 = vshrl.u32 %v960, 7
        %v962 = vsub.s32 0, %v961
        %v963 = vrot.slane %v905, %v962
        %v965 = vadd.f32 %v957, %v963
        %v966 = vadd.f32 %v958, %v963
        %967 = vst.msk [vmem:[#allocation4] sm:$0x3] %vm651, 0.0
        %968 = vst.msk [vmem:[#allocation4 + $0x12] sm:$0x3] %vm651, 0.0
        %969 = vst.msk [vmem:[#allocation4 + $0x2] sm:$0xff] %vm557, %v965
        %970 = vst.msk [vmem:[#allocation4 + $0xa] sm:$0xff] %vm557, %v966
        %s971 = scalar_lea.vmem %s6, 16
        %v972 = vld [vmem:[%s971] sm:$0x1f]
        %v973 = vld [vmem:[#allocation4] ss:$2 sm:$0xff]
        %v974 = vlaneseq
        %v975 = vshrl.u32 %v974, 7
        %v976 = vsub.s32 0, %v975
        %v977 = vrot.slane %v972, %v976
        %v978 = vmul.f32 %v977, %v973
        %s979 = scalar_lea.vmem [#allocation4], 1
        %v980 = vld [vmem:[%s979] ss:$2 sm:$0xff]
        %v981 = vlaneseq
        %v982 = vshrl.u32 %v981, 7
        %v983 = vsub.s32 1, %v982
        %v984 = vrot.slane %v972, %v983
        %v985 = vmul.f32 %v984, %v980
        %v986 = vadd.f32 %v978, %v985
        %s987 = scalar_lea.vmem [#allocation4], 2
        %v988 = vld [vmem:[%s987] ss:$2 sm:$0xff]
        %v989 = vlaneseq
        %v990 = vshrl.u32 %v989, 7
        %v991 = vsub.s32 2, %v990
        %v992 = vrot.slane %v972, %v991
        %v993 = vmul.f32 %v992, %v988
        %v994 = vadd.f32 %v986, %v993
        %s995 = scalar_lea.vmem [#allocation4], 3
        %v996 = vld [vmem:[%s995] ss:$2 sm:$0xff]
        %v997 = vlaneseq
        %v998 = vshrl.u32 %v997, 7
        %v999 = vsub.s32 3, %v998
        %v1000 = vrot.slane %v972, %v999
        %v1001 = vmul.f32 %v1000, %v996
        %v1002 = vadd.f32 %v994, %v1001
        %s1003 = scalar_lea.vmem [#allocation4], 4
        %v1004 = vld [vmem:[%s1003] ss:$2 sm:$0xff]
        %v1005 = vlaneseq
        %v1006 = vshrl.u32 %v1005, 7
        %v1007 = vsub.s32 4, %v1006
        %v1008 = vrot.slane %v972, %v1007
        %v1009 = vmul.f32 %v1008, %v1004
        %v1010 = vadd.f32 %v1002, %v1009
        %s1011 = scalar_lea.vmem %s7, 2
        %v1012 = vld [vmem:[%s1011] sm:$0x1]
        %v1014 = vlaneseq
        %v1015 = vshrl.u32 %v1014, 7
        %v1016 = vsub.s32 0, %v1015
        %v1017 = vrot.slane %v1012, %v1016
        %v1019 = vadd.f32 %v1010, %v1017
        %s1020 = scalar_lea.vmem %s8, 2
        %v1021 = vld [vmem:[%s1020] sm:$0x1]
        %s1022 = scalar_lea.vmem %s9, 2
        %v1023 = vld [vmem:[%s1022] sm:$0x1]
        %v1024 = vsel %vm557, %v1019, 0.0
        %1025 = vadd.xlane.f32.xlu0 %v1024
        %v1026 = vpop.xlane.xlu0 %1025
        %v1027 = vrot.slane %v1026, 4
        %v1028 = vadd.f32 %v1026, %v1027
        %v1029 = vrot.slane %v1028, 2
        %v1030 = vadd.f32 %v1028, %v1029
        %v1031 = vrot.slane %v1030, 1
        %v1032 = vadd.f32 %v1030, %v1031
        %s1033 = vtos %v1032
        %v1034 = vmul.f32 %v1019, %v1019
        %v1035 = vsel %vm557, %v1034, 0.0
        %1036 = vadd.xlane.f32.xlu0 %v1035
        %v1037 = vpop.xlane.xlu0 %1036
        %v1038 = vrot.slane %v1037, 4
        %v1039 = vadd.f32 %v1037, %v1038
        %v1040 = vrot.slane %v1039, 2
        %v1041 = vadd.f32 %v1039, %v1040
        %v1042 = vrot.slane %v1041, 1
        %v1043 = vadd.f32 %v1041, %v1042
        %s1044 = vtos %v1043
        %v1045 = vrcp.pop 256.0
        %s1046 = vtos %v1045
        %s1047 = smul.f32 %s1033, %s1046
        %v1048 = vrcp.pop 256.0
        %s1049 = vtos %v1048
        %s1050 = smul.f32 %s1044, %s1049
        %s1051 = smul.f32 %s1047, %s1047
        %s1052 = ssub.f32 %s1050, %s1051
        %s1053 = smax.f32 %s1052, 0.0
        %v1054 = vstv %s1047
        %v1055 = vsub.f32 %v1019, %v1054
        %s1056 = sadd.f32 %s1053, 1e-08
        %v1057 = vstv %s1056
        %v1058 = vrsqrt.pop %v1057
        %s1059 = vtos %v1058
        %v1060 = vstv %s1059
        %v1061 = vmul.f32 %v1055, %v1060
        %v1063 = vlaneseq
        %v1064 = vshrl.u32 %v1063, 7
        %v1065 = vsub.s32 0, %v1064
        %v1066 = vrot.slane %v1021, %v1065
        %v1068 = vmul.f32 %v1061, %v1066
        %v1070 = vlaneseq
        %v1071 = vshrl.u32 %v1070, 7
        %v1072 = vsub.s32 0, %v1071
        %v1073 = vrot.slane %v1023, %v1072
        %v1075 = vadd.f32 %v1068, %v1073
        %1076 = vst.msk [vmem:[#allocation5] sm:$0x3] %vm651, 0.0
        %1077 = vst.msk [vmem:[#allocation5 + $0xa] sm:$0x3] %vm651, 0.0
        %1078 = vst.msk [vmem:[#allocation5 + $0x2] sm:$0xff] %vm557, %v1075
        %s1079 = scalar_lea.vmem %s6, 24
        %v1080 = vld [vmem:[%s1079] sm:$0x1f]
        %v1081 = vld [vmem:[#allocation5] ss:$2 sm:$0xf]
        %v1082 = vlaneseq
        %v1083 = vshrl.u32 %v1082, 7
        %v1084 = vsub.s32 0, %v1083
        %v1085 = vrot.slane %v1080, %v1084
        %v1086 = vmul.f32 %v1085, %v1081
        %s1087 = scalar_lea.vmem [#allocation5], 1
        %v1088 = vld [vmem:[%s1087] ss:$2 sm:$0xf]
        %v1089 = vlaneseq
        %v1090 = vshrl.u32 %v1089, 7
        %v1091 = vsub.s32 1, %v1090
        %v1092 = vrot.slane %v1080, %v1091
        %v1093 = vmul.f32 %v1092, %v1088
        %v1094 = vadd.f32 %v1086, %v1093
        %s1095 = scalar_lea.vmem [#allocation5], 2
        %v1096 = vld [vmem:[%s1095] ss:$2 sm:$0xf]
        %v1097 = vlaneseq
        %v1098 = vshrl.u32 %v1097, 7
        %v1099 = vsub.s32 2, %v1098
        %v1100 = vrot.slane %v1080, %v1099
        %v1101 = vmul.f32 %v1100, %v1096
        %v1102 = vadd.f32 %v1094, %v1101
        %s1103 = scalar_lea.vmem [#allocation5], 3
        %v1104 = vld [vmem:[%s1103] ss:$2 sm:$0xf]
        %v1105 = vlaneseq
        %v1106 = vshrl.u32 %v1105, 7
        %v1107 = vsub.s32 3, %v1106
        %v1108 = vrot.slane %v1080, %v1107
        %v1109 = vmul.f32 %v1108, %v1104
        %v1110 = vadd.f32 %v1102, %v1109
        %s1111 = scalar_lea.vmem [#allocation5], 4
        %v1112 = vld [vmem:[%s1111] ss:$2 sm:$0xf]
        %v1113 = vlaneseq
        %v1114 = vshrl.u32 %v1113, 7
        %v1115 = vsub.s32 4, %v1114
        %v1116 = vrot.slane %v1080, %v1115
        %v1117 = vmul.f32 %v1116, %v1112
        %v1118 = vadd.f32 %v1110, %v1117
        %s1119 = scalar_lea.vmem %s7, 3
        %v1120 = vld [vmem:[%s1119] sm:$0x1]
        %v1122 = vlaneseq
        %v1123 = vshrl.u32 %v1122, 7
        %v1124 = vsub.s32 0, %v1123
        %v1125 = vrot.slane %v1120, %v1124
        %v1127 = vadd.f32 %v1118, %v1125
        %s1128 = scalar_lea.vmem %s8, 3
        %v1129 = vld [vmem:[%s1128] sm:$0x1]
        %s1130 = scalar_lea.vmem %s9, 3
        %v1131 = vld [vmem:[%s1130] sm:$0x1]
        %vm1132 = vcmask 257024
        %v1133 = vsel %vm1132, %v1127, 0.0
        %1134 = vadd.xlane.f32.xlu0 %v1133
        %v1135 = vpop.xlane.xlu0 %1134
        %v1136 = vrot.slane %v1135, 4
        %v1137 = vadd.f32 %v1135, %v1136
        %v1138 = vrot.slane %v1137, 2
        %v1139 = vadd.f32 %v1137, %v1138
        %v1140 = vrot.slane %v1139, 1
        %v1141 = vadd.f32 %v1139, %v1140
        %s1142 = vtos %v1141
        %v1143 = vmul.f32 %v1127, %v1127
        %v1144 = vsel %vm1132, %v1143, 0.0
        %1145 = vadd.xlane.f32.xlu0 %v1144
        %v1146 = vpop.xlane.xlu0 %1145
        %v1147 = vrot.slane %v1146, 4
        %v1148 = vadd.f32 %v1146, %v1147
        %v1149 = vrot.slane %v1148, 2
        %v1150 = vadd.f32 %v1148, %v1149
        %v1151 = vrot.slane %v1150, 1
        %v1152 = vadd.f32 %v1150, %v1151
        %s1153 = vtos %v1152
        %v1154 = vrcp.pop 128.0
        %s1155 = vtos %v1154
        %s1156 = smul.f32 %s1142, %s1155
        %v1157 = vrcp.pop 128.0
        %s1158 = vtos %v1157
        %s1159 = smul.f32 %s1153, %s1158
        %s1160 = smul.f32 %s1156, %s1156
        %s1161 = ssub.f32 %s1159, %s1160
        %s1162 = smax.f32 %s1161, 0.0
        %v1163 = vstv %s1156
        %v1164 = vsub.f32 %v1127, %v1163
        %s1165 = sadd.f32 %s1162, 1e-08
        %v1166 = vstv %s1165
        %v1167 = vrsqrt.pop %v1166
        %s1168 = vtos %v1167
        %v1169 = vstv %s1168
        %v1170 = vmul.f32 %v1164, %v1169
        %v1172 = vlaneseq
        %v1173 = vshrl.u32 %v1172, 7
        %v1174 = vsub.s32 0, %v1173
        %v1175 = vrot.slane %v1129, %v1174
        %v1177 = vmul.f32 %v1170, %v1175
        %v1179 = vlaneseq
        %v1180 = vshrl.u32 %v1179, 7
        %v1181 = vsub.s32 0, %v1180
        %v1182 = vrot.slane %v1131, %v1181
        %v1184 = vadd.f32 %v1177, %v1182
        %1185 = vst.msk [vmem:[#allocation6] sm:$0x3] %vm651, 0.0
        %1186 = vst.msk [vmem:[#allocation6 + $0x6] sm:$0x3] %vm651, 0.0
        %1187 = vst.msk [vmem:[#allocation6 + $0x2] sm:$0xf] %vm1132, %v1184
        %v1188 = vld [vmem:[#allocation6 + $0x2] sm:$0xf]
        %v1189 = vld [vmem:[%s1095] ss:$2 sm:$0xf]
        %v1190 = vadd.f32 %v1189, %v1188
        %1191 = vst [vmem:[%s1095] ss:$2 sm:$0xf] %v1190
        %v1192 = vld [vmem:[%s1103] ss:$2 sm:$0xf]
        %v1193 = vadd.f32 %v1192, %v1188
        %1194 = vst [vmem:[%s1103] ss:$2 sm:$0xf] %v1193
        %v1195 = vld [vmem:[#allocation5 + $0x2] sm:$0xff]
        %v1196 = vld [vmem:[%s987] ss:$2 sm:$0xff]
        %v1197 = vadd.f32 %v1196, %v1195
        %1198 = vst [vmem:[%s987] ss:$2 sm:$0xff] %v1197
        %v1199 = vld [vmem:[%s995] ss:$2 sm:$0xff]
        %v1200 = vadd.f32 %v1199, %v1195
        %1201 = vst [vmem:[%s995] ss:$2 sm:$0xff] %v1200
        %v1202 = vld [vmem:[#allocation4 + $0x2] sm:$0xff]
        %v1203 = vld [vmem:[#allocation4 + $0xa] sm:$0xff]
        %v1204 = vld [vmem:[%s856] ss:$2 sm:$0xff]
        %v1205 = vld [vmem:[%s858] ss:$2 sm:$0xff]
        %v1206 = vadd.f32 %v1204, %v1202
        %v1207 = vadd.f32 %v1205, %v1203
        %1208 = vst [vmem:[%s856] ss:$2 sm:$0xff] %v1206
        %1209 = vst [vmem:[%s858] ss:$2 sm:$0xff] %v1207
        %v1210 = vld [vmem:[%s868] ss:$2 sm:$0xff]
        %v1211 = vld [vmem:[%s870] ss:$2 sm:$0xff]
        %v1212 = vadd.f32 %v1210, %v1202
        %v1213 = vadd.f32 %v1211, %v1203
        %1214 = vst [vmem:[%s868] ss:$2 sm:$0xff] %v1212
        %1215 = vst [vmem:[%s870] ss:$2 sm:$0xff] %v1213
        %v1216 = vld [vmem:[#allocation3 + $0x2] sm:$0xff]
        %v1217 = vld [vmem:[#allocation3 + $0xa] sm:$0xff]
        %v1218 = vld [vmem:[#allocation3 + $0x12] sm:$0xff]
        %v1219 = vld [vmem:[#allocation3 + $0x1a] sm:$0xff]
        %v1220 = vld [vmem:[%s10] sm:$0x1]
        %v1221 = vld [vmem:[%s11] sm:$0x1]
        %v1222 = vsel %vm557, %v1216, 0.0
        %v1223 = vsel %vm557, %v1217, 0.0
        %v1224 = vadd.f32 %v1222, %v1223
        %v1225 = vsel %vm557, %v1218, 0.0
        %v1226 = vadd.f32 %v1224, %v1225
        %v1227 = vsel %vm557, %v1219, 0.0
        %v1228 = vadd.f32 %v1226, %v1227
        %1229 = vadd.xlane.f32.xlu0 %v1228
        %v1230 = vpop.xlane.xlu0 %1229
        %v1231 = vrot.slane %v1230, 4
        %v1232 = vadd.f32 %v1230, %v1231
        %v1233 = vrot.slane %v1232, 2
        %v1234 = vadd.f32 %v1232, %v1233
        %v1235 = vrot.slane %v1234, 1
        %v1236 = vadd.f32 %v1234, %v1235
        %s1237 = vtos %v1236
        %v1238 = vmul.f32 %v1216, %v1216
        %v1239 = vmul.f32 %v1217, %v1217
        %v1240 = vmul.f32 %v1218, %v1218
        %v1241 = vmul.f32 %v1219, %v1219
        %v1242 = vsel %vm557, %v1238, 0.0
        %v1243 = vsel %vm557, %v1239, 0.0
        %v1244 = vadd.f32 %v1242, %v1243
        %v1245 = vsel %vm557, %v1240, 0.0
        %v1246 = vadd.f32 %v1244, %v1245
        %v1247 = vsel %vm557, %v1241, 0.0
        %v1248 = vadd.f32 %v1246, %v1247
        %1249 = vadd.xlane.f32.xlu0 %v1248
        %v1250 = vpop.xlane.xlu0 %1249
        %v1251 = vrot.slane %v1250, 4
        %v1252 = vadd.f32 %v1250, %v1251
        %v1253 = vrot.slane %v1252, 2
        %v1254 = vadd.f32 %v1252, %v1253
        %v1255 = vrot.slane %v1254, 1
        %v1256 = vadd.f32 %v1254, %v1255
        %s1257 = vtos %v1256
        %v1258 = vrcp.pop 1024.0
        %s1259 = vtos %v1258
        %s1260 = smul.f32 %s1237, %s1259
        %v1261 = vrcp.pop 1024.0
        %s1262 = vtos %v1261
        %s1263 = smul.f32 %s1257, %s1262
        %s1264 = smul.f32 %s1260, %s1260
        %s1265 = ssub.f32 %s1263, %s1264
        %s1266 = smax.f32 %s1265, 0.0
        %v1267 = vstv %s1260
        %v1268 = vsub.f32 %v1216, %v1267
        %v1269 = vsub.f32 %v1217, %v1267
        %v1270 = vsub.f32 %v1218, %v1267
        %v1271 = vsub.f32 %v1219, %v1267
        %s1272 = sadd.f32 %s1266, 1e-08
        %v1273 = vstv %s1272
        %v1274 = vrsqrt.pop %v1273
        %s1275 = vtos %v1274
        %v1276 = vstv %s1275
        %v1277 = vmul.f32 %v1268, %v1276
        %v1278 = vmul.f32 %v1269, %v1276
        %v1279 = vmul.f32 %v1270, %v1276
        %v1280 = vmul.f32 %v1271, %v1276
        %v1282 = vlaneseq
        %v1283 = vshrl.u32 %v1282, 7
        %v1284 = vsub.s32 0, %v1283
        %v1285 = vrot.slane %v1220, %v1284
        %v1287 = vmul.f32 %v1277, %v1285
        %v1288 = vmul.f32 %v1278, %v1285
        %v1289 = vmul.f32 %v1279, %v1285
        %v1290 = vmul.f32 %v1280, %v1285
        %v1292 = vlaneseq
        %v1293 = vshrl.u32 %v1292, 7
        %v1294 = vsub.s32 0, %v1293
        %v1295 = vrot.slane %v1221, %v1294
        %v1297 = vadd.f32 %v1287, %v1295
        %v1298 = vadd.f32 %v1288, %v1295
        %v1299 = vadd.f32 %v1289, %v1295
        %v1300 = vadd.f32 %v1290, %v1295
        %vm1301 = vcmp.gt.f32.partialorder %v1297, 0.0
        %vm1302 = vcmp.gt.f32.partialorder %v1298, 0.0
        %vm1303 = vcmp.gt.f32.partialorder %v1299, 0.0
        %vm1304 = vcmp.gt.f32.partialorder %v1300, 0.0
        %s1305 = sld [smem:[#allocation7 + $0x1]]
        %v1306 = vstv %s1305
        %v1307 = vmul.f32 %v1306, %v1297
        %v1308 = vmul.f32 %v1306, %v1298
        %v1309 = vmul.f32 %v1306, %v1299
        %v1310 = vmul.f32 %v1306, %v1300
        %v1311 = vsel %vm1301, %v1297, %v1307
        %v1312 = vsel %vm1302, %v1298, %v1308
        %v1313 = vsel %vm1303, %v1299, %v1309
        %v1314 = vsel %vm1304, %v1300, %v1310
        %v1315 = vpack.c.bf16 %v1312, %v1311
        %v1316 = vpack.c.bf16 %v1314, %v1313
        %v1317 = vld [vmem:[%s12] sm:$0xff]
        %v1318 = vld [vmem:[%s12 + $0x8] sm:$0xff]
        %v1319 = vld [vmem:[%s12 + $0x10] sm:$0xff]
        %v1320 = vld [vmem:[%s12 + $0x18] sm:$0xff]
        %v1321 = vpack.c.bf16 %v1318, %v1317
        %v1322 = vpack.c.bf16 %v1320, %v1319
        %v1323 = vld [vmem:[%s13] sm:$0x1]
        %v1325 = vlaneseq
        %v1326 = vshrl.u32 %v1325, 7
        %v1327 = vsub.s32 0, %v1326
        %v1328 = vrot.slane %v1323, %v1327
        %v1331 = vsel %vm557, %v1315, 0
        %v1334 = vsel %vm557, %v1316, 0
        %1336 = vmatprep.subr.bf16.mxu0 0
        %1337 = vmatpush1.bf16.msra.mxu0 0
        %1338 = vmatprep.subr.bf16.mxu0 0
        %1339 = vmatpush1.bf16.msra.mxu0 0
        %1340 = vmatprep.subr.bf16.mxu0 0
        %1341 = vmatpush1.bf16.msra.mxu0 0
        %1342 = vmatprep.subr.bf16.mxu0 0
        %1343 = vmatpush1.bf16.msra.mxu0 0
        %1344 = vmatprep.subr.bf16.mxu0 0
        %1345 = vmatpush1.bf16.msra.mxu0 0
        %1346 = vmatprep.subr.bf16.mxu0 0
        %1347 = vmatpush1.bf16.msra.mxu0 0
        %1348 = vmatprep.subr.bf16.mxu0 0
        %1349 = vmatpush1.bf16.msra.mxu0 %v1322
        %1350 = vmatprep.subr.bf16.mxu0 0
        %1351 = vmatpush1.bf16.msra.mxu0 %v1321
        %1352 = vmatprep.subr.bf16.mxu0 0
        %1353 = vmatpush2.bf16.msra.mxu0 0
        %1354 = vmatprep.subr.bf16.mxu0 0
        %1355 = vmatpush2.bf16.msra.mxu0 0
        %1356 = vmatprep.subr.bf16.mxu0 0
        %1357 = vmatpush2.bf16.msra.mxu0 0
        %1358 = vmatprep.subr.bf16.mxu0 0
        %1359 = vmatpush2.bf16.msra.mxu0 0
        %1360 = vmatprep.subr.bf16.mxu0 0
        %1361 = vmatpush2.bf16.msra.mxu0 0
        %1362 = vmatprep.subr.bf16.mxu0 0
        %1363 = vmatpush2.bf16.msra.mxu0 0
        %1364 = vmatprep.subr.bf16.mxu0 0
        %1365 = vmatpush2.bf16.msra.mxu0 0
        %1366 = vmatprep.subr.bf16.mxu0 0
        %1367 = vmatpush2.bf16.msra.mxu0 0
        %1368 = vmatprep.mubr.bf16.mxu0 0
        %1369 = vmatmul.mubr.bf16.gmra.mxu0 %v1331
        %v1370 = vpop.f32.mrf.mxu0
        %v1371 = vadd.f32 %v1328, %v1370
        %v1372 = vpop.f32.mrf.mxu0
        %v1373 = vpop.f32.mrf.mxu0
        %v1374 = vadd.f32 %v1328, %v1373
        %v1375 = vpop.f32.mrf.mxu0
        %1376 = vmatprep.mubr.bf16.mxu0 0
        %1377 = vmatmul.mubr.bf16.gmra.mxu0 %v1334
        %v1378 = vpop.f32.mrf.mxu0
        %v1379 = vadd.f32 %v1328, %v1378
        %v1380 = vpop.f32.mrf.mxu0
        %v1381 = vpop.f32.mrf.mxu0
        %v1382 = vadd.f32 %v1328, %v1381
        %v1383 = vpop.f32.mrf.mxu0
        %1384 = vdwg.mxu0
        %v1385 = vld [vmem:[%s476] sm:$0xff]
        %v1386 = vld [vmem:[%s476 + $0x8] sm:$0xff]
        %v1387 = vld [vmem:[%s476 + $0x10] sm:$0xff]
        %v1388 = vld [vmem:[%s476 + $0x18] sm:$0xff]
        %v1389 = vadd.f32 %v1371, %v1385
        %v1390 = vadd.f32 %v1374, %v1386
        %v1391 = vadd.f32 %v1379, %v1387
        %v1392 = vadd.f32 %v1382, %v1388
        %1393 = vst.msk [vmem:[%s481] sm:$0xff] %vm499, %v1389
        %1394 = vst.msk [vmem:[%s481 + $0x8] sm:$0xff] %vm499, %v1390
        %1395 = vst.msk [vmem:[%s481 + $0x10] sm:$0xff] %vm499, %v1391
        %1396 = vst.msk [vmem:[%s481 + $0x18] sm:$0xff] %vm499, %v1392
        %p1397 = scmp.lt.s32.totalorder %s26, 1
        %s1398 = scalar_select %p1397, %s26, 1
        %s1399 = smul.addr %s1398, 4
        %s1400 = smul.addr %s1399, 8
        %s1401 = scalar_lea.vmem %s14, %s1400
        // Predicated region
        $region81: #{uconv_block_forward.1} parent=75 // pred_check
          %p1402 = pneg %p343
        $region82: #{uconv_block_forward.1} parent=75 // pred_check_branch
          %1404 = sbr.rel (%p1402) target = $region84
        $region83: #{uconv_block_forward.1} parent=75 // pred_region
          _
        $region84: #{uconv_block_forward.1} parent=75 // pred_fallthru
          _
      $region76: #{uconv_block_forward.1} parent=5 // pred_fallthru
        _
      %p1405 = scmp.le.s32.totalorder 2, %s21
      // Predicated region
      $region85: #{uconv_block_forward.1} parent=5 // pred_check
        %p1406 = pneg %p1405
      $region86: #{uconv_block_forward.1} parent=5 // pred_check_branch
        %1408 = sbr.rel (%p1406) target = $region88
      $region87: #{uconv_block_forward.1} parent=5 // pred_region
        %s1409 = ssub.s32 %s21, 2
        // Predicated region
        $region89: #{uconv_block_forward.1} parent=87 // pred_check
          %p1410 = pneg %p349
        $region90: #{uconv_block_forward.1} parent=87 // pred_check_branch
          %1412 = sbr.rel (%p1410) target = $region92
        $region91: #{uconv_block_forward.1} parent=87 // pred_region
          %p1413 = scmp.lt.s32.totalorder %s27, 1
          %s1414 = scalar_select %p1413, %s27, 1
          %s1415 = smul.addr %s1414, 4
          %s1416 = smul.addr %s1415, 8
          %s1417 = scalar_lea.vmem %s14, %s1416
        $region92: #{uconv_block_forward.1} parent=87 // pred_fallthru
          _
      $region88: #{uconv_block_forward.1} parent=5 // pred_fallthru
        _
    $region6: #{uconv_block_forward.1} parent=1 // loop_footer
      %s25 = sadd.s32 1, %s21
    $region7: #{uconv_block_forward.1} parent=1 // loop_footer_branch
      %20 = sbr.rel target = $region3
    $region8: #{uconv_block_forward.1} parent=1 // loop_exit
      _
    %1418 = vsyncpa [#allocation8], 1
    %s1419 = scalar_lea.sflag [#allocation8], 1
    %1420 = vsyncpa %s1419, 1

</llo_original>
